<compile_context>
chip_gen: v7x
topology: tpu7x:2x2x1
jax: 0.10.0
libtpu: 0.0.40
codegen_flags: <defaults>
</compile_context>

<pallas_src>
import functools

import jax
import jax.numpy as jnp
from jax import lax
from jax.experimental import pallas as pl
from jax.experimental.pallas import tpu as pltpu


def _round_up(a, b):
    return (a + b - 1) // b * b


def _largest_tile(total, unit, cap):
    """Largest multiple of `unit` that divides `total` and is <= cap (>= unit)."""
    q = total // unit
    cap_units = max(1, cap // unit)
    best = 1
    for d in range(1, min(q, cap_units) + 1):
        if q % d == 0:
            best = d
    return best * unit


def _chip_kind():
    try:
        return jax.devices()[0].device_kind.lower()
    except Exception:  # pragma: no cover - CPU / interpret fallbacks
        return ""


# ----------------------------- Pallas kernel --------------------------------

def _cp_fused_kernel(w_ref, b_ref, xagg_ref, xin_ref, rwx_ref, rwm_ref,
                     logits_ref, out_ref, *, sigmoid_dtype):
    """Fused context-prior + resize kernel for one (batch, N tile, RM tile).

    w_ref     : (TRM, F)       stacked 1x1x1 prior-conv weights for this RM tile
    b_ref     : (TRM, 1)       prior-conv bias (f32)
    xagg_ref  : (1, F, TN)     ASPP output tile (bf16)
    xin_ref   : (1, F, TN)     original input tile (resize conv x-slice, bf16)
    rwx_ref   : (F, F)         resize weight columns acting on the input x
    rwm_ref   : (1, F, TRM)    (resize_ctx @ mega) pre-contracted, per batch
    logits_ref: (1, TRM, TN)   raw prior logits -> ret['P_logits']
    out_ref   : (1, F, TN)     resize-conv output (f32), accumulated over RM tiles
    """
    rm_i = pl.program_id(2)

    # 1) context-prior logits for this RM block: one MXU pass, bias on the VPU.
    logits = jnp.dot(w_ref[...], xagg_ref[0],
                     preferred_element_type=jnp.float32)              # (TRM, TN) f32
    logits = logits + b_ref[...]                                      # broadcast add
    logits_ref[0] = logits.astype(logits_ref.dtype)

    # 2) sigmoid prior on the EUP (bf16 on v6e/v7x, f32 on v5e).
    prior = jax.nn.sigmoid(logits.astype(sigmoid_dtype)).astype(jnp.bfloat16)

    # 3) fused resize 1x1x1 conv, accumulated across RM tiles directly in the
    #    resident f32 output block:
    #    out = rw_x @ x_in + (resize_ctx @ mega) @ sigmoid(logits)
    ctx = jnp.dot(rwm_ref[0], prior, preferred_element_type=jnp.float32)   # (F, TN)

    @pl.when(rm_i == 0)
    def _():
        out_ref[0] = jnp.dot(rwx_ref[...], xin_ref[0],
                             preferred_element_type=jnp.float32) + ctx

    @pl.when(rm_i > 0)
    def _():
        out_ref[0] = out_ref[0] + ctx


def context_prior_resize_pallas(x_in_flat, x_agg_flat, mega_flat,
                                w_rel, b_rel, resize_w, *,
                                logits_dtype=jnp.bfloat16):
    """Fused context-prior + resize conv.

    x_in_flat : (bs, F, N)    original module input, flattened voxels
    x_agg_flat: (bs, F, N)    ASPP output, flattened voxels
    mega_flat : (bs, 2F, M)   mega context, channel-major
    w_rel     : (R, M, F)     per-relation 1x1x1 conv weights
    b_rel     : (R, M, 1)     per-relation conv bias
    resize_w  : (F, F + R*2F) resize 1x1x1 conv weight (no bias)

    Returns (logits (bs, R*M, N) in `logits_dtype`, resized (bs, F, N) f32).
    TODO(synk): pass logits_dtype=jnp.float32 if the downstream loss needs
                full-precision P_logits.
    """
    bs, F, N = x_agg_flat.shape
    C2, M = mega_flat.shape[1], mega_flat.shape[2]
    R = w_rel.shape[0]
    RM = R * M

    # --- per-chip tiling / precision policy -------------------------------
    kind = _chip_kind()
    is_v5 = "v5" in kind
    is_v7 = "v7" in kind
    rm_align = 128 if is_v5 else 256           # v5e MXU 4x128^2, v6e/v7x 2x256^2
    want_tile_n = 512 if is_v7 else 1024       # v7x has 64 MiB VMEM, others 128 MiB
    vmem_limit = (48 if is_v7 else 64) * 1024 * 1024
    vmem_budget = vmem_limit - 8 * 1024 * 1024
    sigmoid_dtype = jnp.float32 if is_v5 else jnp.bfloat16   # no bf16 EUP on v5e
    lb = jnp.dtype(logits_dtype).itemsize

    n_pad = _round_up(N, 128)                  # pad only to 128, not tile_n
    rm_pad = _round_up(RM, rm_align)

    tile_n = _largest_tile(n_pad, 128, want_tile_n)
    # Expose >=2 grid steps so both TensorCores get work on v7x-style chips.
    if bs * (n_pad // tile_n) < 2 and n_pad >= 256:
        tile_n = _largest_tile(n_pad, 128, tile_n // 2)
    tile_rm = _largest_tile(rm_pad, rm_align, 512)

    def vmem_est(trm, tn):
        return (2 * trm * tn * lb              # logits out (double-buffered)
                + trm * tn * (4 + 2)           # in-kernel f32 logits + bf16 prior
                + 2 * trm * F * 2              # w
                + 2 * trm * 4                  # bias
                + 2 * F * trm * 2              # rw_mega
                + 2 * 2 * F * tn * 2           # x_agg + x_in
                + 2 * F * tn * 4               # resize out (f32)
                + F * F * 2)                   # rw_x

    while vmem_est(tile_rm, tile_n) > vmem_budget:
        if tile_rm > rm_align:
            tile_rm = _largest_tile(rm_pad, rm_align, tile_rm - rm_align)
        elif tile_n > 128:
            tile_n = _largest_tile(n_pad, 128, tile_n - 128)
        else:
            break

    rm_pad_amt = rm_pad - RM
    n_pad_amt = n_pad - N

    # --- wrapper-side weight prep (tiny) -----------------------------------
    w_flat = w_rel.reshape(RM, F)
    b_flat = b_rel.reshape(RM, 1)
    if rm_pad_amt:
        w_flat = jnp.pad(w_flat, ((0, rm_pad_amt), (0, 0)))
        b_flat = jnp.pad(b_flat, ((0, rm_pad_amt), (0, 0)))
    w_flat = w_flat.astype(jnp.bfloat16)
    b_flat = b_flat.astype(jnp.float32)

    # Split the resize weight: columns for the original input x, and columns
    # for the R context blocks. Pre-contract the latter with the mega context
    # (exact reassociation: resize_ctx @ (mega @ prior) == (resize_ctx@mega) @ prior).
    rw_x = resize_w[:, :F].astype(jnp.bfloat16)                        # (F, F)
    rw_ctx = resize_w[:, F:].reshape(F, R, C2)                         # (F, R, 2F)
    rw_mega = jnp.einsum('frc,bcm->bfrm', rw_ctx, mega_flat)           # (bs,F,R,M)
    rw_mega = rw_mega.reshape(bs, F, RM)
    if rm_pad_amt:
        rw_mega = jnp.pad(rw_mega, ((0, 0), (0, 0), (0, rm_pad_amt)))
    rw_mega = rw_mega.astype(jnp.bfloat16)

    def prep(a):                                    # (bs, C, N) -> bf16, padded
        if n_pad_amt:
            a = jnp.pad(a, ((0, 0), (0, 0), (0, n_pad_amt)))
        return a.astype(jnp.bfloat16)

    x_agg = prep(x_agg_flat)                                           # (bs,F,n_pad)
    x_in = prep(x_in_flat)                                             # (bs,F,n_pad)

    grid = (bs, n_pad // tile_n, rm_pad // tile_rm)

    flops = 2 * bs * n_pad * (rm_pad * F + F * rm_pad + F * F)
    transcendentals = bs * rm_pad * n_pad
    bytes_accessed = (rm_pad * F * 2 + rm_pad * 4 + F * F * 2
                      + bs * F * rm_pad * 2
                      + 2 * bs * F * n_pad * 2
                      + bs * rm_pad * n_pad * lb
                      + bs * F * n_pad * 4)

    kernel = functools.partial(_cp_fused_kernel, sigmoid_dtype=sigmoid_dtype)
    logits, out = pl.pallas_call(
        kernel,
        out_shape=(jax.ShapeDtypeStruct((bs, rm_pad, n_pad), logits_dtype),
                   jax.ShapeDtypeStruct((bs, F, n_pad), jnp.float32)),
        grid_spec=pltpu.PrefetchScalarGridSpec(
            num_scalar_prefetch=0,
            grid=grid,
            in_specs=[
                pl.BlockSpec((tile_rm, F), lambda b, n, r: (r, 0)),
                pl.BlockSpec((tile_rm, 1), lambda b, n, r: (r, 0)),
                pl.BlockSpec((1, F, tile_n), lambda b, n, r: (b, 0, n)),
                pl.BlockSpec((1, F, tile_n), lambda b, n, r: (b, 0, n)),
                pl.BlockSpec((F, F), lambda b, n, r: (0, 0)),
                pl.BlockSpec((1, F, tile_rm), lambda b, n, r: (b, 0, r)),
            ],
            out_specs=[
                pl.BlockSpec((1, tile_rm, tile_n), lambda b, n, r: (b, r, n)),
                pl.BlockSpec((1, F, tile_n), lambda b, n, r: (b, 0, n)),
            ],
        ),
        compiler_params=pltpu.CompilerParams(
            dimension_semantics=("parallel", "parallel", "arbitrary"),
            vmem_limit_bytes=vmem_limit),
        cost_estimate=pl.CostEstimate(
            flops=flops, transcendentals=transcendentals,
            bytes_accessed=bytes_accessed),
    )(w_flat, b_flat, x_agg, x_in, rw_x, rw_mega)

    if rm_pad_amt or n_pad_amt:
        logits = logits[:, :RM, :N]
        out = out[..., :N]
    return logits, out


# --------------------------- plain-JAX glue ops ------------------------------

def conv3d(x, w, *, stride=1, padding=0, dilation=1, bias=None):
    if isinstance(stride, int):
        stride = (stride,) * 3
    if isinstance(padding, int):
        padding = (padding,) * 3
    if isinstance(dilation, int):
        dilation = (dilation,) * 3
    out = lax.conv_general_dilated(
        x, w,
        window_strides=stride,
        padding=[(p, p) for p in padding],
        rhs_dilation=dilation,
        dimension_numbers=("NCDHW", "OIDHW", "NCDHW"))
    if bias is not None:
        out = out + bias.reshape(1, -1, 1, 1, 1)
    return out


def pointwise_conv(x, w):
    """1x1x1 conv; tiny channel counts -> leave to XLA so it fuses with BN/ReLU."""
    return jnp.einsum('oc,bcdhw->bodhw', w, x)


def batchnorm3d(x, gamma, beta, eps=1e-5):
    # eval-mode BN: running_mean=0, running_var=1 (fresh init).
    scale = (gamma / jnp.sqrt(1.0 + eps)).reshape(1, -1, 1, 1, 1)
    return x * scale + beta.reshape(1, -1, 1, 1, 1)


ASPP_DILATIONS = (1, 2, 3)


def aspp_forward(x, p):
    """MonoScene ASPP-3D: sum of dilated conv->bn->relu->conv->bn branches + residual."""
    y = None
    for i, dil in enumerate(ASPP_DILATIONS):
        t = conv3d(x, p["conv1_w"][i], padding=dil, dilation=dil)
        t = jax.nn.relu(batchnorm3d(t, p["bn1_g"][i], p["bn1_b"][i]))
        t = conv3d(t, p["conv2_w"][i], padding=dil, dilation=dil)
        t = batchnorm3d(t, p["bn2_g"][i], p["bn2_b"][i])
        y = t if y is None else y + t
    return jax.nn.relu(y + x)


def bottleneck3d_forward(x, p):
    """MonoScene Bottleneck3D, stride=1, dilation=[1,1,1], no downsample."""
    # conv1: 1x1x1
    out1 = jax.nn.relu(batchnorm3d(pointwise_conv(x, p["w1"]), p["bn1_g"], p["bn1_b"]))
    # axis-separable 1x1x3 / 1x3x1 / 3x1x1 convs (plain-JAX glue)
    out2 = batchnorm3d(conv3d(out1, p["w2"], padding=(0, 0, 1)), p["bn2_g"], p["bn2_b"])
    out3 = batchnorm3d(conv3d(jax.nn.relu(out2), p["w3"], padding=(0, 1, 0)),
                       p["bn3_g"], p["bn3_b"])
    out3 = out3 + out2
    out4 = batchnorm3d(conv3d(jax.nn.relu(out3), p["w4"], padding=(1, 0, 0)),
                       p["bn4_g"], p["bn4_b"])
    out4 = out4 + out2 + out3
    # conv5: 1x1x1, planes -> C
    out5 = batchnorm3d(pointwise_conv(jax.nn.relu(out4), p["w5"]),
                       p["bn5_g"], p["bn5_b"])
    return jax.nn.relu(out5 + x)


# --------------------------- CPMegaVoxels forward ----------------------------

def cp_mega_voxels_forward(x, params):
    bs, f, D, H, W = x.shape
    N = D * H * W
    M = (D // 2) * (H // 2) * (W // 2)
    R = params["rel_w"].shape[0]

    # 1) ASPP aggregation
    x_agg = aspp_forward(x, params["aspp"])

    # 2) mega context: 3x3x3 stride-2 conv, f -> 2f  (glue conv)
    pad = ((D + 1) % 2, (H + 1) % 2, (W + 1) % 2)
    mega = conv3d(x_agg, params["mega_w"], stride=2, padding=pad, bias=params["mega_b"])
    mega_flat = mega.reshape(bs, 2 * f, M)                    # (bs, 2f, M)

    # 3) fused: prior logits + sigmoid + bmm-with-mega + concat + resize conv
    logits, xr_flat = context_prior_resize_pallas(
        x.reshape(bs, f, N), x_agg.reshape(bs, f, N), mega_flat,
        params["rel_w"], params["rel_b"], params["resize_w"])
    P_logits = logits.reshape(bs, R, M, N)

    # 4) Process (Bottleneck3D) on the resized features
    xr = bottleneck3d_forward(xr_flat.reshape(bs, f, D, H, W), params["process"])

    return {"P_logits": P_logits, "x": xr}


# ------------------------------ parameter init -------------------------------

def init_params(key, feature, size, n_relations):
    D, H, W = size
    M = (D // 2) * (H // 2) * (W // 2)
    planes = feature // 4
    keys = iter(jax.random.split(key, 32))

    def w(shape, fan_in):
        return (jax.random.normal(next(keys), shape, jnp.float32)
                * (1.0 / jnp.sqrt(float(fan_in)))).astype(jnp.float32)

    ones = lambda c: jnp.ones((c,), jnp.float32)
    zeros = lambda c: jnp.zeros((c,), jnp.float32)

    params = {}
    params["aspp"] = {
        "conv1_w": [w((feature, feature, 3, 3, 3), feature * 27) for _ in ASPP_DILATIONS],
        "conv2_w": [w((feature, feature, 3, 3, 3), feature * 27) for _ in ASPP_DILATIONS],
        "bn1_g": [ones(feature)] * 3, "bn1_b": [zeros(feature)] * 3,
        "bn2_g": [ones(feature)] * 3, "bn2_b": [zeros(feature)] * 3,
    }
    params["mega_w"] = w((2 * feature, feature, 3, 3, 3), feature * 27)
    params["mega_b"] = zeros(2 * feature)
    params["rel_w"] = w((n_relations, M, feature), feature)            # 1x1x1 conv weights
    params["rel_b"] = (jax.random.normal(next(keys), (n_relations, M, 1), jnp.float32)
                       * 0.01).astype(jnp.float32)
    cin = 2 * feature * n_relations + feature
    params["resize_w"] = w((feature, cin), cin)
    params["process"] = {
        "w1": w((planes, feature), feature),
        "w2": w((planes, planes, 1, 1, 3), planes * 3),
        "w3": w((planes, planes, 1, 3, 1), planes * 3),
        "w4": w((planes, planes, 3, 1, 1), planes * 3),
        "w5": w((feature, planes), planes),
        "bn1_g": ones(planes), "bn1_b": zeros(planes),
        "bn2_g": ones(planes), "bn2_b": zeros(planes),
        "bn3_g": ones(planes), "bn3_b": zeros(planes),
        "bn4_g": ones(planes), "bn4_b": zeros(planes),
        "bn5_g": ones(feature), "bn5_b": zeros(feature),
    }
    return params


# ----------------------------------- main ------------------------------------

if __name__ == "__main__":
    feature = 8
    size = (8, 8, 8)
    n_relations = 4
    bs = 2

    key = jax.random.PRNGKey(0)
    kx, kp = jax.random.split(key)
    x = jax.random.normal(kx, (bs, feature) + size, jnp.float32)   # NCDHW
    params = init_params(kp, feature, size, n_relations)

    fwd = jax.jit(cp_mega_voxels_forward)
    ret = fwd(x, params)
    ret = jax.block_until_ready(ret)

    N = size[0] * size[1] * size[2]
    M = (size[0] // 2) * (size[1] // 2) * (size[2] // 2)
    assert ret["P_logits"].shape == (bs, n_relations, M, N)
    assert ret["x"].shape == (bs, feature) + size
    assert jnp.all(jnp.isfinite(ret["P_logits"])) and jnp.all(jnp.isfinite(ret["x"]))
    print("KERNEL_OK")
</pallas_src>

<mosaic_0001>
module attributes {stable_mosaic.version = 11 : i64} {
  func.func @_cp_fused_kernel(%arg0: i32, %arg1: i32, %arg2: i32, %arg3: memref<256x8xbf16, #tpu.memory_space<vmem>>, %arg4: memref<256x1xf32, #tpu.memory_space<vmem>>, %arg5: memref<1x8x512xbf16, #tpu.memory_space<vmem>>, %arg6: memref<1x8x512xbf16, #tpu.memory_space<vmem>>, %arg7: memref<8x8xbf16, #tpu.memory_space<vmem>>, %arg8: memref<1x8x256xbf16, #tpu.memory_space<vmem>>, %arg9: memref<1x256x512xbf16, #tpu.memory_space<vmem>>, %arg10: memref<1x8x512xf32, #tpu.memory_space<vmem>>) attributes {dimension_semantics = [#tpu.dimension_semantics<parallel>, #tpu.dimension_semantics<parallel>, #tpu.dimension_semantics<arbitrary>], iteration_bounds = array<i64: 2, 1, 1>, scalar_prefetch = 0 : i64, scratch_operands = 0 : i64, tpu.core_type = #tpu.core_type<tc>, window_params = [{transform_indices = @transform_0, window_bounds = array<i64: 256, 8>}, {transform_indices = @transform_1, window_bounds = array<i64: 256, 1>}, {transform_indices = @transform_2, window_bounds = array<i64: 1, 8, 512>}, {transform_indices = @transform_3, window_bounds = array<i64: 1, 8, 512>}, {pipeline_mode = #tpu.pipeline_mode<synchronous>, transform_indices = @transform_4, window_bounds = array<i64: 8, 8>}, {transform_indices = @transform_5, window_bounds = array<i64: 1, 8, 256>}, {transform_indices = @transform_6, window_bounds = array<i64: 1, 256, 512>}, {transform_indices = @transform_7, window_bounds = array<i64: 1, 8, 512>}]} {
    %c0 = arith.constant 0 : index
    %c0_0 = arith.constant 0 : index
    %0 = vector.load %arg3[%c0, %c0_0] : memref<256x8xbf16, #tpu.memory_space<vmem>>, vector<256x8xbf16>
    %c0_1 = arith.constant 0 : index
    %c0_2 = arith.constant 0 : index
    %c0_3 = arith.constant 0 : index
    %1 = vector.load %arg5[%c0_1, %c0_2, %c0_3] : memref<1x8x512xbf16, #tpu.memory_space<vmem>>, vector<1x8x512xbf16>
    %2 = vector.shape_cast %1 : vector<1x8x512xbf16> to vector<8x512xbf16>
    %cst = arith.constant dense<0.000000e+00> : vector<256x512xf32>
    %3 = tpu.matmul %0, %2, %cst {dimension_numbers = #tpu.dot_dimension_numbers<[1], [0], [0], [1], [0, 0, 1, 1], [], []>} : vector<256x8xbf16>, vector<8x512xbf16>, vector<256x512xf32> -> vector<256x512xf32>
    %c0_4 = arith.constant 0 : index
    %c0_5 = arith.constant 0 : index
    %4 = vector.load %arg4[%c0_4, %c0_5] : memref<256x1xf32, #tpu.memory_space<vmem>>, vector<256x1xf32>
    %5 = vector.broadcast %4 : vector<256x1xf32> to vector<256x512xf32>
    %6 = arith.addf %3, %5 : vector<256x512xf32>
    %7 = arith.truncf %6 : vector<256x512xf32> to vector<256x512xbf16>
    %c0_6 = arith.constant 0 : index
    %c0_7 = arith.constant 0 : index
    %c0_8 = arith.constant 0 : index
    %8 = vector.load %arg9[%c0_6, %c0_7, %c0_8] : memref<1x256x512xbf16, #tpu.memory_space<vmem>>, vector<1x256x512xbf16>
    %9 = vector.shape_cast %8 : vector<1x256x512xbf16> to vector<256x512xbf16>
    %10 = vector.shape_cast %7 : vector<256x512xbf16> to vector<1x256x512xbf16>
    tpu.vector_store %arg9[%c0_6, %c0_7, %c0_8], %10 {strides = array<i32>} : memref<1x256x512xbf16, #tpu.memory_space<vmem>>, vector<1x256x512xbf16>,
    %11 = arith.truncf %6 : vector<256x512xf32> to vector<256x512xbf16>
    %12 = arith.negf %11 : vector<256x512xbf16>
    %13 = math.exp %12 : vector<256x512xbf16>
    %cst_9 = arith.constant 1.000000e+00 : bf16
    %14 = vector.broadcast %cst_9 : bf16 to vector<256x512xbf16>
    %15 = arith.addf %14, %13 : vector<256x512xbf16>
    %16 = arith.divf %14, %15 : vector<256x512xbf16>
    %c0_10 = arith.constant 0 : index
    %c0_11 = arith.constant 0 : index
    %c0_12 = arith.constant 0 : index
    %17 = vector.load %arg8[%c0_10, %c0_11, %c0_12] : memref<1x8x256xbf16, #tpu.memory_space<vmem>>, vector<1x8x256xbf16>
    %18 = vector.shape_cast %17 : vector<1x8x256xbf16> to vector<8x256xbf16>
    %cst_13 = arith.constant dense<0.000000e+00> : vector<8x512xf32>
    %19 = tpu.matmul %18, %16, %cst_13 {dimension_numbers = #tpu.dot_dimension_numbers<[1], [0], [0], [1], [0, 0, 1, 1], [], []>} : vector<8x256xbf16>, vector<256x512xbf16>, vector<8x512xf32> -> vector<8x512xf32>
    %c0_i32 = arith.constant 0 : i32
    %20 = arith.cmpi eq, %arg2, %c0_i32 : i32
    %21 = arith.extui %20 : i1 to i32
    %c0_i32_14 = arith.constant 0 : i32
    %22 = arith.cmpi ne, %21, %c0_i32_14 : i32
    scf.if %22 {
      %c0_17 = arith.constant 0 : index
      %c0_18 = arith.constant 0 : index
      %26 = vector.load %arg7[%c0_17, %c0_18] : memref<8x8xbf16, #tpu.memory_space<vmem>>, vector<8x8xbf16>
      %c0_19 = arith.constant 0 : index
      %c0_20 = arith.constant 0 : index
      %c0_21 = arith.constant 0 : index
      %27 = vector.load %arg6[%c0_19, %c0_20, %c0_21] : memref<1x8x512xbf16, #tpu.memory_space<vmem>>, vector<1x8x512xbf16>
      %28 = vector.shape_cast %27 : vector<1x8x512xbf16> to vector<8x512xbf16>
      %cst_22 = arith.constant dense<0.000000e+00> : vector<8x512xf32>
      %29 = tpu.matmul %26, %28, %cst_22 {dimension_numbers = #tpu.dot_dimension_numbers<[1], [0], [0], [1], [0, 0, 1, 1], [], []>} : vector<8x8xbf16>, vector<8x512xbf16>, vector<8x512xf32> -> vector<8x512xf32>
      %30 = arith.addf %29, %19 : vector<8x512xf32>
      %c0_23 = arith.constant 0 : index
      %c0_24 = arith.constant 0 : index
      %c0_25 = arith.constant 0 : index
      %31 = vector.load %arg10[%c0_23, %c0_24, %c0_25] : memref<1x8x512xf32, #tpu.memory_space<vmem>>, vector<1x8x512xf32>
      %32 = vector.shape_cast %31 : vector<1x8x512xf32> to vector<8x512xf32>
      %33 = vector.shape_cast %30 : vector<8x512xf32> to vector<1x8x512xf32>
      tpu.vector_store %arg10[%c0_23, %c0_24, %c0_25], %33 {strides = array<i32>} : memref<1x8x512xf32, #tpu.memory_space<vmem>>, vector<1x8x512xf32>,
    } else {
    }
    %c0_i32_15 = arith.constant 0 : i32
    %23 = arith.cmpi sgt, %arg2, %c0_i32_15 : i32
    %24 = arith.extui %23 : i1 to i32
    %c0_i32_16 = arith.constant 0 : i32
    %25 = arith.cmpi ne, %24, %c0_i32_16 : i32
    scf.if %25 {
      %c0_17 = arith.constant 0 : index
      %c0_18 = arith.constant 0 : index
      %c0_19 = arith.constant 0 : index
      %26 = vector.load %arg10[%c0_17, %c0_18, %c0_19] : memref<1x8x512xf32, #tpu.memory_space<vmem>>, vector<1x8x512xf32>
      %27 = vector.shape_cast %26 : vector<1x8x512xf32> to vector<8x512xf32>
      %28 = arith.addf %27, %19 : vector<8x512xf32>
      %c0_20 = arith.constant 0 : index
      %c0_21 = arith.constant 0 : index
      %c0_22 = arith.constant 0 : index
      %29 = vector.load %arg10[%c0_20, %c0_21, %c0_22] : memref<1x8x512xf32, #tpu.memory_space<vmem>>, vector<1x8x512xf32>
      %30 = vector.shape_cast %29 : vector<1x8x512xf32> to vector<8x512xf32>
      %31 = vector.shape_cast %28 : vector<8x512xf32> to vector<1x8x512xf32>
      tpu.vector_store %arg10[%c0_20, %c0_21, %c0_22], %31 {strides = array<i32>} : memref<1x8x512xf32, #tpu.memory_space<vmem>>, vector<1x8x512xf32>,
    } else {
    }
    return
  }
  func.func @transform_0(%arg0: i32, %arg1: i32, %arg2: i32) -> (i32, i32) {
    %c0_i32 = arith.constant 0 : i32
    %c0_i32_0 = arith.constant 0 : i32
    return %arg2, %c0_i32 : i32, i32
  }
  func.func @transform_1(%arg0: i32, %arg1: i32, %arg2: i32) -> (i32, i32) {
    %c0_i32 = arith.constant 0 : i32
    %c0_i32_0 = arith.constant 0 : i32
    return %arg2, %c0_i32 : i32, i32
  }
  func.func @transform_2(%arg0: i32, %arg1: i32, %arg2: i32) -> (i32, i32, i32) {
    %c0_i32 = arith.constant 0 : i32
    %c0_i32_0 = arith.constant 0 : i32
    return %arg0, %c0_i32, %arg1 : i32, i32, i32
  }
  func.func @transform_3(%arg0: i32, %arg1: i32, %arg2: i32) -> (i32, i32, i32) {
    %c0_i32 = arith.constant 0 : i32
    %c0_i32_0 = arith.constant 0 : i32
    return %arg0, %c0_i32, %arg1 : i32, i32, i32
  }
  func.func @transform_4(%arg0: i32, %arg1: i32, %arg2: i32) -> (i32, i32) {
    %c0_i32 = arith.constant 0 : i32
    %c0_i32_0 = arith.constant 0 : i32
    %c0_i32_1 = arith.constant 0 : i32
    return %c0_i32, %c0_i32_0 : i32, i32
  }
  func.func @transform_5(%arg0: i32, %arg1: i32, %arg2: i32) -> (i32, i32, i32) {
    %c0_i32 = arith.constant 0 : i32
    %c0_i32_0 = arith.constant 0 : i32
    return %arg0, %c0_i32, %arg2 : i32, i32, i32
  }
  func.func @transform_6(%arg0: i32, %arg1: i32, %arg2: i32) -> (i32, i32, i32) {
    %c0_i32 = arith.constant 0 : i32
    return %arg0, %arg2, %arg1 : i32, i32, i32
  }
  func.func @transform_7(%arg0: i32, %arg1: i32, %arg2: i32) -> (i32, i32, i32) {
    %c0_i32 = arith.constant 0 : i32
    %c0_i32_0 = arith.constant 0 : i32
    return %arg0, %c0_i32, %arg1 : i32, i32, i32
  }
}

</mosaic_0001>

<llo_original>
// kernel: cp_mega_voxels_forward.1
$region0: #{cp_mega_voxels_forward.1}
  #allocation0 [shape = 'u32[]', space=smem, size = 0x4, offset = 0x4, fixed_abs, tag = 'smem constant byte address 0x4 - core index']
  #allocation1 [shape = 'u32[144,128]{1,0:T(1,128)}', space=vmem, size = 0x12000, scoped, tag = 'internal scratch']
  %s0 = inlined_call_operand.hbm [shape: bf16[256,8], index: 0, kind: input, shape index: {}]
  %s1 = inlined_call_operand.hbm [shape: f32[256,1], index: 1, kind: input, shape index: {}]
  %s2 = inlined_call_operand.hbm [shape: bf16[2,8,512], index: 2, kind: input, shape index: {}]
  %s3 = inlined_call_operand.hbm [shape: bf16[2,8,512], index: 3, kind: input, shape index: {}]
  %s4 = inlined_call_operand.hbm [shape: bf16[8,8], index: 4, kind: input, shape index: {}]
  %s5 = inlined_call_operand.hbm [shape: bf16[2,8,256], index: 5, kind: input, shape index: {}]
  %s6 = inlined_call_operand.hbm [shape: bf16[2,256,512], index: 6, kind: output, shape index: {0}]
  %s7 = inlined_call_operand.hbm [shape: f32[2,8,512], index: 7, kind: output, shape index: {1}]
  %8 = xla_tuple %s6, %s7
  %s9 = sld [smem:[#allocation0]]
  $region97: #{cp_mega_voxels_forward.1} parent=0
    _
  %s11 = ssub.s32 1, %s9
  %s12 = scalar_select 0, %s11, %s9
  $region1: #{cp_mega_voxels_forward.1} parent=0
    #allocation2 [shape = 'u8[65536]{0}', space=vmem, size = 0x10000, scoped, tag = 'input window, operand 0, single buffered']
    #allocation3 [shape = 's32[2]{0}', space=sflag, size = 0x8, scoped, tag = 'scoped memory for cp_mega_voxels_forward.1']
    #allocation4 [shape = 's32[2]{0}', space=sflag, size = 0x8, scoped, tag = 'scoped memory for cp_mega_voxels_forward.1']
    #allocation5 [shape = 'u8[131072]{0}', space=vmem, size = 0x20000, scoped, tag = 'input window, operand 1, single buffered']
    #allocation6 [shape = 's32[1]{0}', space=sflag, size = 0x4, scoped, tag = 'scoped memory for cp_mega_voxels_forward.1']
    #allocation7 [shape = 'u8[16384]{0}', space=vmem, size = 0x4000, scoped, tag = 'input window, operand 2']
    #allocation8 [shape = 'u8[16384]{0}', space=vmem, size = 0x4000, scoped, tag = 'input window, operand 3']
    #allocation9 [shape = 'u8[2048]{0}', space=vmem, size = 0x800, scoped, tag = 'input window, operand 4, single buffered']
    #allocation10 [shape = 'u8[8192]{0}', space=vmem, size = 0x2000, scoped, tag = 'input window, operand 5']
    #allocation11 [shape = 's32[2]{0}', space=sflag, size = 0x8, scoped, tag = 'scoped memory for cp_mega_voxels_forward.1']
    #allocation12 [shape = 'u8[524288]{0}', space=vmem, size = 0x80000, scoped, tag = 'output window, operand 0']
    #allocation13 [shape = 'u8[32768]{0}', space=vmem, size = 0x8000, scoped, tag = 'output window, operand 1']
    #allocation14 [shape = 's32[2]{0}', space=sflag, size = 0x8, scoped, tag = 'scoped memory for cp_mega_voxels_forward.1']
    %13 = vsyncpa [#allocation3], 0
    %14 = vsyncpa [#allocation6], 0
    %15 = vsyncpa [#allocation11], 0
    %s16 = scalar_lea.sflag [#allocation11], 1
    %17 = vsyncpa %s16, 0
    %18 = vsyncpa [#allocation4], 0
    %s19 = scalar_lea.sflag [#allocation4], 1
    %20 = vsyncpa %s19, 0
    %21 = vsyncpa [#allocation14], 0
    %s22 = scalar_lea.sflag [#allocation14], 1
    %23 = vsyncpa %s22, 0
    loop: start=0, step=1, limit=4
    $region2: #{cp_mega_voxels_forward.1} parent=1 // loop_pre_header
      _
    $region3: #{cp_mega_voxels_forward.1} parent=1 // loop_header
      %s25 = sphi 0, %s29
      %p26 = scmp.ge.s32.totalorder %s25, 4
      %s32 = sphi 0, %s51
      %s33 = sphi 0, %s47
      %s34 = sphi 0, %s43
      %s35 = sphi 0, %s32
      %s36 = sphi 0, %s33
      %s37 = sphi 0, %s34
      %s38 = sphi 0, %s35
      %s39 = sphi 0, %s36
      %s40 = sphi 0, %s37
      %s54 = sphi 0, %s56
      %s57 = sphi 0, %s54
      %s58 = sphi 0, %s57
      %s74 = sphi 0, %s58
      %s80 = sphi 0, %s82
      %s83 = sphi 0, %s80
      %s84 = sphi 0, %s83
      %s100 = sphi 0, %s84
      %s108 = sphi 0, %s110
      %s111 = sphi 0, %s108
      %s112 = sphi 0, %s111
      %s128 = sphi 0, %s112
      %s136 = sphi 0, %s138
      %s139 = sphi 0, %s136
      %s140 = sphi 0, %s139
      %s156 = sphi 0, %s140
      %s160 = sphi 0, %s160
      %s162 = sphi 0, %s160
      %s163 = sphi 0, %s162
      %s177 = sphi 0, %s163
      %s185 = sphi 0, %s187
      %s188 = sphi 0, %s185
      %s189 = sphi 0, %s188
      %s205 = sphi 0, %s189
      %s215 = sphi 0, %s217
      %s218 = sphi 0, %s215
      %s219 = sphi 0, %s218
      %s235 = sphi 0, %s219
      %s243 = sphi 0, %s245
      %s246 = sphi 0, %s243
      %s247 = sphi 0, %s246
      %s263 = sphi 0, %s247
    $region4: #{cp_mega_voxels_forward.1} parent=1 // loop_header_branch
      %28 = sbr.rel (%p26) target = $region8
    $region5: #{cp_mega_voxels_forward.1} parent=1 // loop_body
      %s30 = ssub.s32 %s25, 1
      %s31 = ssub.s32 %s25, 2
      %s41 = sadd.s32 1, %s34
      %p42 = scmp.ge.s32.totalorder %s41, 1
      %s43 = scalar_select %p42, 0, %s41
      %s44 = sadd.s32 1, %s33
      %s45 = scalar_select %p42, %s44, %s33
      %p46 = scmp.ge.s32.totalorder %s45, 1
      %s47 = scalar_select %p46, 0, %s45
      %s48 = sadd.s32 1, %s32
      %s49 = scalar_select %p46, %s48, %s32
      %p50 = scmp.ge.s32.totalorder %s49, 2
      %s51 = scalar_select %p50, 0, %s49
      %s52 = ssub.s32 %s34, %s43
      %p53 = scmp.eq.s32.totalorder %s52, 0
      %s55 = sadd.s32 %s54, 1
      %s56 = scalar_select %p53, %s54, %s55
      %p59 = pneg %p53
      %p60 = scmp.eq.s32.totalorder %s25, 1
      %p61 = por %p59, %p60
      %p62 = scmp.ne.s32.totalorder %s54, %s57
      %p63 = scmp.eq.s32.totalorder %s25, 0
      %p64 = por %p62, %p63
      %p65 = scmp.ne.s32.totalorder %s54, %s57
      %p66 = scmp.eq.s32.totalorder %s30, 1
      %p67 = por %p65, %p66
      %p68 = scmp.ne.s32.totalorder %s57, %s58
      %p69 = scmp.eq.s32.totalorder %s30, 0
      %p70 = por %p68, %p69
      %p71 = scmp.ne.s32.totalorder %s57, %s58
      %p72 = scmp.eq.s32.totalorder %s31, 1
      %p73 = por %p71, %p72
      %p75 = scmp.ne.s32.totalorder %s58, %s74
      %p76 = scmp.eq.s32.totalorder %s31, 0
      %p77 = por %p75, %p76
      %s78 = ssub.s32 %s34, %s43
      %p79 = scmp.eq.s32.totalorder %s78, 0
      %s81 = sadd.s32 %s80, 1
      %s82 = scalar_select %p79, %s80, %s81
      %p85 = pneg %p79
      %p86 = scmp.eq.s32.totalorder %s25, 1
      %p87 = por %p85, %p86
      %p88 = scmp.ne.s32.totalorder %s80, %s83
      %p89 = scmp.eq.s32.totalorder %s25, 0
      %p90 = por %p88, %p89
      %p91 = scmp.ne.s32.totalorder %s80, %s83
      %p92 = scmp.eq.s32.totalorder %s30, 1
      %p93 = por %p91, %p92
      %p94 = scmp.ne.s32.totalorder %s83, %s84
      %p95 = scmp.eq.s32.totalorder %s30, 0
      %p96 = por %p94, %p95
      %p97 = scmp.ne.s32.totalorder %s83, %s84
      %p98 = scmp.eq.s32.totalorder %s31, 1
      %p99 = por %p97, %p98
      %p101 = scmp.ne.s32.totalorder %s84, %s100
      %p102 = scmp.eq.s32.totalorder %s31, 0
      %p103 = por %p101, %p102
      %s104 = ssub.s32 %s32, %s51
      %s105 = ssub.s32 %s33, %s47
      %s106 = sor.u32 %s104, %s105
      %p107 = scmp.eq.s32.totalorder %s106, 0
      %s109 = sadd.s32 %s108, 1
      %s110 = scalar_select %p107, %s108, %s109
      %p113 = pneg %p107
      %p114 = scmp.eq.s32.totalorder %s25, 1
      %p115 = por %p113, %p114
      %p116 = scmp.ne.s32.totalorder %s108, %s111
      %p117 = scmp.eq.s32.totalorder %s25, 0
      %p118 = por %p116, %p117
      %p119 = scmp.ne.s32.totalorder %s108, %s111
      %p120 = scmp.eq.s32.totalorder %s30, 1
      %p121 = por %p119, %p120
      %p122 = scmp.ne.s32.totalorder %s111, %s112
      %p123 = scmp.eq.s32.totalorder %s30, 0
      %p124 = por %p122, %p123
      %p125 = scmp.ne.s32.totalorder %s111, %s112
      %p126 = scmp.eq.s32.totalorder %s31, 1
      %p127 = por %p125, %p126
      %p129 = scmp.ne.s32.totalorder %s112, %s128
      %p130 = scmp.eq.s32.totalorder %s31, 0
      %p131 = por %p129, %p130
      %s132 = ssub.s32 %s32, %s51
      %s133 = ssub.s32 %s33, %s47
      %s134 = sor.u32 %s132, %s133
      %p135 = scmp.eq.s32.totalorder %s134, 0
      %s137 = sadd.s32 %s136, 1
      %s138 = scalar_select %p135, %s136, %s137
      %p141 = pneg %p135
      %p142 = scmp.eq.s32.totalorder %s25, 1
      %p143 = por %p141, %p142
      %p144 = scmp.ne.s32.totalorder %s136, %s139
      %p145 = scmp.eq.s32.totalorder %s25, 0
      %p146 = por %p144, %p145
      %p147 = scmp.ne.s32.totalorder %s136, %s139
      %p148 = scmp.eq.s32.totalorder %s30, 1
      %p149 = por %p147, %p148
      %p150 = scmp.ne.s32.totalorder %s139, %s140
      %p151 = scmp.eq.s32.totalorder %s30, 0
      %p152 = por %p150, %p151
      %p153 = scmp.ne.s32.totalorder %s139, %s140
      %p154 = scmp.eq.s32.totalorder %s31, 1
      %p155 = por %p153, %p154
      %p157 = scmp.ne.s32.totalorder %s140, %s156
      %p158 = scmp.eq.s32.totalorder %s31, 0
      %p159 = por %p157, %p158
      %s161 = sadd.s32 %s160, 1
      %p164 = scmp.eq.s32.totalorder %s25, 1
      %p165 = scmp.ne.s32.totalorder %s160, %s162
      %p166 = scmp.eq.s32.totalorder %s25, 0
      %p167 = por %p165, %p166
      %p168 = scmp.ne.s32.totalorder %s160, %s162
      %p169 = scmp.eq.s32.totalorder %s30, 1
      %p170 = por %p168, %p169
      %p171 = scmp.ne.s32.totalorder %s162, %s163
      %p172 = scmp.eq.s32.totalorder %s30, 0
      %p173 = por %p171, %p172
      %p174 = scmp.ne.s32.totalorder %s162, %s163
      %p175 = scmp.eq.s32.totalorder %s31, 1
      %p176 = por %p174, %p175
      %p178 = scmp.ne.s32.totalorder %s163, %s177
      %p179 = scmp.eq.s32.totalorder %s31, 0
      %p180 = por %p178, %p179
      %s181 = ssub.s32 %s32, %s51
      %s182 = ssub.s32 %s34, %s43
      %s183 = sor.u32 %s181, %s182
      %p184 = scmp.eq.s32.totalorder %s183, 0
      %s186 = sadd.s32 %s185, 1
      %s187 = scalar_select %p184, %s185, %s186
      %p190 = pneg %p184
      %p191 = scmp.eq.s32.totalorder %s25, 1
      %p192 = por %p190, %p191
      %p193 = scmp.ne.s32.totalorder %s185, %s188
      %p194 = scmp.eq.s32.totalorder %s25, 0
      %p195 = por %p193, %p194
      %p196 = scmp.ne.s32.totalorder %s185, %s188
      %p197 = scmp.eq.s32.totalorder %s30, 1
      %p198 = por %p196, %p197
      %p199 = scmp.ne.s32.totalorder %s188, %s189
      %p200 = scmp.eq.s32.totalorder %s30, 0
      %p201 = por %p199, %p200
      %p202 = scmp.ne.s32.totalorder %s188, %s189
      %p203 = scmp.eq.s32.totalorder %s31, 1
      %p204 = por %p202, %p203
      %p206 = scmp.ne.s32.totalorder %s189, %s205
      %p207 = scmp.eq.s32.totalorder %s31, 0
      %p208 = por %p206, %p207
      %s209 = ssub.s32 %s32, %s51
      %s210 = ssub.s32 %s34, %s43
      %s211 = sor.u32 %s209, %s210
      %s212 = ssub.s32 %s33, %s47
      %s213 = sor.u32 %s211, %s212
      %p214 = scmp.eq.s32.totalorder %s213, 0
      %s216 = sadd.s32 %s215, 1
      %s217 = scalar_select %p214, %s215, %s216
      %p220 = pneg %p214
      %p221 = scmp.eq.s32.totalorder %s25, 1
      %p222 = por %p220, %p221
      %p223 = scmp.ne.s32.totalorder %s215, %s218
      %p224 = scmp.eq.s32.totalorder %s25, 0
      %p225 = por %p223, %p224
      %p226 = scmp.ne.s32.totalorder %s215, %s218
      %p227 = scmp.eq.s32.totalorder %s30, 1
      %p228 = por %p226, %p227
      %p229 = scmp.ne.s32.totalorder %s218, %s219
      %p230 = scmp.eq.s32.totalorder %s30, 0
      %p231 = por %p229, %p230
      %p232 = scmp.ne.s32.totalorder %s218, %s219
      %p233 = scmp.eq.s32.totalorder %s31, 1
      %p234 = por %p232, %p233
      %p236 = scmp.ne.s32.totalorder %s219, %s235
      %p237 = scmp.eq.s32.totalorder %s31, 0
      %p238 = por %p236, %p237
      %s239 = ssub.s32 %s32, %s51
      %s240 = ssub.s32 %s33, %s47
      %s241 = sor.u32 %s239, %s240
      %p242 = scmp.eq.s32.totalorder %s241, 0
      %s244 = sadd.s32 %s243, 1
      %s245 = scalar_select %p242, %s243, %s244
      %p248 = pneg %p242
      %p249 = scmp.eq.s32.totalorder %s25, 1
      %p250 = por %p248, %p249
      %p251 = scmp.ne.s32.totalorder %s243, %s246
      %p252 = scmp.eq.s32.totalorder %s25, 0
      %p253 = por %p251, %p252
      %p254 = scmp.ne.s32.totalorder %s243, %s246
      %p255 = scmp.eq.s32.totalorder %s30, 1
      %p256 = por %p254, %p255
      %p257 = scmp.ne.s32.totalorder %s246, %s247
      %p258 = scmp.eq.s32.totalorder %s30, 0
      %p259 = por %p257, %p258
      %p260 = scmp.ne.s32.totalorder %s246, %s247
      %p261 = scmp.eq.s32.totalorder %s31, 1
      %p262 = por %p260, %p261
      %p264 = scmp.ne.s32.totalorder %s247, %s263
      %p265 = scmp.eq.s32.totalorder %s31, 0
      %p266 = por %p264, %p265
      %p267 = scmp.le.s32.totalorder 1, %s25
      %p268 = scmp.lt.s32.totalorder %s25, 3
      %p269 = pnand %p267, %p268
      %p270 = pneg %p269
      // Predicated region
      $region9: #{cp_mega_voxels_forward.1} parent=5 // pred_check
        _
      $region10: #{cp_mega_voxels_forward.1} parent=5 // pred_check_branch
        %272 = sbr.rel (%p269) target = $region12
      $region11: #{cp_mega_voxels_forward.1} parent=5 // pred_region
        %s273 = ssub.s32 %s25, 1
        // Predicated region
        $region13: #{cp_mega_voxels_forward.1} parent=11 // pred_check
          %p274 = pneg %p70
        $region14: #{cp_mega_voxels_forward.1} parent=11 // pred_check_branch
          %276 = sbr.rel (%p274) target = $region16
        $region15: #{cp_mega_voxels_forward.1} parent=11 // pred_region
          %s277 = smul.u32 32, %s37
          %s279 = ssub.s32 2048, 2048
          %280 = vsyncadd [#allocation3], %s279
          %s281 = smul.addr %s277, 64
          %s282 = scalar_lea.hbm %s0, %s281
          %s283 = sshll.u32 [#allocation2], 4
          %s284 = int_to_ptr.vmem [resolvable:$true] %s283
          %289 = dma.hbm_to_vmem [thread:$0]  %s282, 2048, %s284, [#allocation3], 64, 64, 4
        $region16: #{cp_mega_voxels_forward.1} parent=11 // pred_fallthru
          _
        // Predicated region
        $region17: #{cp_mega_voxels_forward.1} parent=11 // pred_check
          %p290 = pneg %p96
        $region18: #{cp_mega_voxels_forward.1} parent=11 // pred_check_branch
          %292 = sbr.rel (%p290) target = $region20
        $region19: #{cp_mega_voxels_forward.1} parent=11 // pred_region
          %s293 = smul.u32 32, %s37
          %s295 = ssub.s32 4096, 4096
          %296 = vsyncadd [#allocation6], %s295
          %s297 = smul.addr %s293, 128
          %s298 = scalar_lea.hbm %s1, %s297
          %s299 = sshll.u32 [#allocation5], 4
          %s300 = int_to_ptr.vmem [resolvable:$true] %s299
          %305 = dma.hbm_to_vmem [thread:$0]  %s298, 4096, %s300, [#allocation6], 128, 128, 8
        $region20: #{cp_mega_voxels_forward.1} parent=11 // pred_fallthru
          _
        // Predicated region
        $region21: #{cp_mega_voxels_forward.1} parent=11 // pred_check
          %p306 = pneg %p173
        $region22: #{cp_mega_voxels_forward.1} parent=11 // pred_check_branch
          %308 = sbr.rel (%p306) target = $region24
        $region23: #{cp_mega_voxels_forward.1} parent=11 // pred_region
          %s310 = ssub.s32 64, 64
          %311 = vsyncadd [#allocation6], %s310
          %s313 = sshll.u32 [#allocation9], 4
          %s314 = int_to_ptr.vmem [resolvable:$true] %s313
          %316 = dma.hbm_to_vmem [thread:$0]  %s4, 64, %s314, [#allocation6]
        $region24: #{cp_mega_voxels_forward.1} parent=11 // pred_fallthru
          _
      $region12: #{cp_mega_voxels_forward.1} parent=5 // pred_fallthru
        _
      %p317 = scmp.lt.s32.totalorder %s25, 2
      // Predicated region
      $region25: #{cp_mega_voxels_forward.1} parent=5 // pred_check
        %p318 = pneg %p317
      $region26: #{cp_mega_voxels_forward.1} parent=5 // pred_check_branch
        %320 = sbr.rel (%p318) target = $region28
      $region27: #{cp_mega_voxels_forward.1} parent=5 // pred_region
        // Predicated region
        $region29: #{cp_mega_voxels_forward.1} parent=27 // pred_check
          %p321 = pneg %p118
        $region30: #{cp_mega_voxels_forward.1} parent=27 // pred_check_branch
          %323 = sbr.rel (%p321) target = $region32
        $region31: #{cp_mega_voxels_forward.1} parent=27 // pred_region
          %s324 = sand.u32 %s25, 1
          %s325 = scalar_lea.sflag [#allocation3], %s324
          %s326 = sand.u32 %s108, 1
          %s327 = smul.addr %s326, 16
          %s328 = scalar_lea.vmem [#allocation7], %s327
          %s329 = smul.u32 4, %s33
          %s331 = ssub.s32 256, 256
          %332 = vsyncadd %s325, %s331
          %s333 = smul.addr %s32, 4
          %s334 = sadd.s32 %s329, %s333
          %s335 = smul.addr %s334, 64
          %s336 = scalar_lea.hbm %s2, %s335
          %s338 = sshll.u32 %s328, 4
          %s339 = int_to_ptr.vmem [resolvable:$true] %s338
          %341 = dma.hbm_to_vmem [thread:$0]  %s336, 256, %s339, %s325
        $region32: #{cp_mega_voxels_forward.1} parent=27 // pred_fallthru
          _
        // Predicated region
        $region33: #{cp_mega_voxels_forward.1} parent=27 // pred_check
          %p342 = pneg %p146
        $region34: #{cp_mega_voxels_forward.1} parent=27 // pred_check_branch
          %344 = sbr.rel (%p342) target = $region36
        $region35: #{cp_mega_voxels_forward.1} parent=27 // pred_region
          %s345 = sand.u32 %s25, 1
          %s346 = scalar_lea.sflag [#allocation3], %s345
          %s347 = sand.u32 %s136, 1
          %s348 = smul.addr %s347, 16
          %s349 = scalar_lea.vmem [#allocation8], %s348
          %s350 = smul.u32 4, %s33
          %s352 = ssub.s32 256, 256
          %353 = vsyncadd %s346, %s352
          %s354 = smul.addr %s32, 4
          %s355 = sadd.s32 %s350, %s354
          %s356 = smul.addr %s355, 64
          %s357 = scalar_lea.hbm %s3, %s356
          %s359 = sshll.u32 %s349, 4
          %s360 = int_to_ptr.vmem [resolvable:$true] %s359
          %362 = dma.hbm_to_vmem [thread:$0]  %s357, 256, %s360, %s346
        $region36: #{cp_mega_voxels_forward.1} parent=27 // pred_fallthru
          _
        // Predicated region
        $region37: #{cp_mega_voxels_forward.1} parent=27 // pred_check
          %p363 = pneg %p195
        $region38: #{cp_mega_voxels_forward.1} parent=27 // pred_check_branch
          %365 = sbr.rel (%p363) target = $region40
        $region39: #{cp_mega_voxels_forward.1} parent=27 // pred_region
          %s366 = sand.u32 %s185, 1
          %s367 = scalar_lea.sflag [#allocation11], %s366
          %s368 = sand.u32 %s185, 1
          %s369 = smul.addr %s368, 8
          %s370 = scalar_lea.vmem [#allocation10], %s369
          %s371 = smul.u32 2, %s34
          %s373 = ssub.s32 128, 128
          %374 = vsyncadd %s367, %s373
          %s375 = smul.addr %s32, 2
          %s376 = sadd.s32 %s371, %s375
          %s377 = smul.addr %s376, 64
          %s378 = scalar_lea.hbm %s5, %s377
          %s380 = sshll.u32 %s370, 4
          %s381 = int_to_ptr.vmem [resolvable:$true] %s380
          %383 = dma.hbm_to_vmem [thread:$0]  %s378, 128, %s381, %s367
        $region40: #{cp_mega_voxels_forward.1} parent=27 // pred_fallthru
          _
      $region28: #{cp_mega_voxels_forward.1} parent=5 // pred_fallthru
        _
      %p384 = scmp.le.s32.totalorder 1, %s25
      %p385 = scmp.lt.s32.totalorder %s25, 3
      %p386 = pnand %p384, %p385
      %p387 = pneg %p386
      // Predicated region
      $region41: #{cp_mega_voxels_forward.1} parent=5 // pred_check
        _
      $region42: #{cp_mega_voxels_forward.1} parent=5 // pred_check_branch
        %389 = sbr.rel (%p386) target = $region44
      $region43: #{cp_mega_voxels_forward.1} parent=5 // pred_region
        %s390 = ssub.s32 %s25, 1
        // Predicated region
        $region45: #{cp_mega_voxels_forward.1} parent=43 // pred_check
          %p391 = pneg %p70
        $region46: #{cp_mega_voxels_forward.1} parent=43 // pred_check_branch
          %393 = sbr.rel (%p391) target = $region48
        $region47: #{cp_mega_voxels_forward.1} parent=43 // pred_region
          %394 = dma.done [#allocation3], 2048
        $region48: #{cp_mega_voxels_forward.1} parent=43 // pred_fallthru
          _
        // Predicated region
        $region49: #{cp_mega_voxels_forward.1} parent=43 // pred_check
          %p395 = pneg %p96
        $region50: #{cp_mega_voxels_forward.1} parent=43 // pred_check_branch
          %397 = sbr.rel (%p395) target = $region52
        $region51: #{cp_mega_voxels_forward.1} parent=43 // pred_region
          %398 = dma.done [#allocation6], 4096
        $region52: #{cp_mega_voxels_forward.1} parent=43 // pred_fallthru
          _
        %s399 = sand.u32 %s30, 1
        %s400 = scalar_lea.sflag [#allocation3], %s399
        %s401 = sand.u32 %s111, 1
        %s402 = smul.addr %s401, 16
        %s403 = scalar_lea.vmem [#allocation7], %s402
        // Predicated region
        $region53: #{cp_mega_voxels_forward.1} parent=43 // pred_check
          %p404 = pneg %p124
        $region54: #{cp_mega_voxels_forward.1} parent=43 // pred_check_branch
          %406 = sbr.rel (%p404) target = $region56
        $region55: #{cp_mega_voxels_forward.1} parent=43 // pred_region
          %407 = dma.done %s400, 256
        $region56: #{cp_mega_voxels_forward.1} parent=43 // pred_fallthru
          _
        %s408 = sand.u32 %s30, 1
        %s409 = scalar_lea.sflag [#allocation3], %s408
        %s410 = sand.u32 %s139, 1
        %s411 = smul.addr %s410, 16
        %s412 = scalar_lea.vmem [#allocation8], %s411
        // Predicated region
        $region57: #{cp_mega_voxels_forward.1} parent=43 // pred_check
          %p413 = pneg %p152
        $region58: #{cp_mega_voxels_forward.1} parent=43 // pred_check_branch
          %415 = sbr.rel (%p413) target = $region60
        $region59: #{cp_mega_voxels_forward.1} parent=43 // pred_region
          %416 = dma.done %s409, 256
        $region60: #{cp_mega_voxels_forward.1} parent=43 // pred_fallthru
          _
        // Predicated region
        $region61: #{cp_mega_voxels_forward.1} parent=43 // pred_check
          %p417 = pneg %p173
        $region62: #{cp_mega_voxels_forward.1} parent=43 // pred_check_branch
          %419 = sbr.rel (%p417) target = $region64
        $region63: #{cp_mega_voxels_forward.1} parent=43 // pred_region
          %420 = dma.done [#allocation6], 64
        $region64: #{cp_mega_voxels_forward.1} parent=43 // pred_fallthru
          _
        %s421 = sand.u32 %s188, 1
        %s422 = scalar_lea.sflag [#allocation11], %s421
        %s423 = sand.u32 %s188, 1
        %s424 = smul.addr %s423, 8
        %s425 = scalar_lea.vmem [#allocation10], %s424
        // Predicated region
        $region65: #{cp_mega_voxels_forward.1} parent=43 // pred_check
          %p426 = pneg %p201
        $region66: #{cp_mega_voxels_forward.1} parent=43 // pred_check_branch
          %428 = sbr.rel (%p426) target = $region68
        $region67: #{cp_mega_voxels_forward.1} parent=43 // pred_region
          %429 = dma.done %s422, 128
        $region68: #{cp_mega_voxels_forward.1} parent=43 // pred_fallthru
          _
        %p430 = pneg %p70
        %p431 = pneg %p67
        %p432 = pneg %p96
        %p433 = pneg %p93
        %s434 = sand.u32 %s30, 1
        %s435 = scalar_lea.sflag [#allocation3], %s434
        %s436 = sand.u32 %s111, 1
        %s437 = smul.addr %s436, 16
        %s438 = scalar_lea.vmem [#allocation7], %s437
        %p439 = pneg %p124
        %p440 = pneg %p121
        %s441 = sand.u32 %s30, 1
        %s442 = scalar_lea.sflag [#allocation3], %s441
        %s443 = sand.u32 %s139, 1
        %s444 = smul.addr %s443, 16
        %s445 = scalar_lea.vmem [#allocation8], %s444
        %p446 = pneg %p152
        %p447 = pneg %p149
        %p448 = pneg %p173
        %p449 = pneg %p170
        %s450 = sand.u32 %s188, 1
        %s451 = scalar_lea.sflag [#allocation11], %s450
        %s452 = sand.u32 %s188, 1
        %s453 = smul.addr %s452, 8
        %s454 = scalar_lea.vmem [#allocation10], %s453
        %p455 = pneg %p201
        %p456 = pneg %p198
        %p457 = pneg %p231
        %p458 = pneg %p228
        %s459 = sand.u32 %s218, 1
        %s460 = scalar_lea.sflag [#allocation4], %s459
        %s461 = sand.u32 %s218, 1
        %s462 = smul.addr %s461, 512
        %s463 = scalar_lea.vmem [#allocation12], %s462
        %p464 = pneg %p259
        %p465 = pneg %p256
        %s466 = sand.u32 %s246, 1
        %s467 = scalar_lea.sflag [#allocation14], %s466
        %s468 = sand.u32 %s246, 1
        %s469 = smul.addr %s468, 32
        %s470 = scalar_lea.vmem [#allocation13], %s469
        %s471 = smul.u32 32, %s37
        %s472 = smul.u32 32, %s37
        %s473 = smul.u32 4, %s36
        %s474 = smul.u32 4, %s36
        %s475 = smul.u32 2, %s37
        %s476 = smul.u32 32, %s37
        %s477 = smul.u32 4, %s36
        %s478 = smul.u32 4, %s36
        %v481 = vld [vmem:[#allocation2] sm:$0xf]
        %v482 = vld [vmem:[#allocation2 + $0x4] sm:$0xf]
        %v483 = vld [vmem:[#allocation2 + $0x8] sm:$0xf]
        %v484 = vld [vmem:[#allocation2 + $0xc] sm:$0xf]
        %v485 = vld [vmem:[#allocation2 + $0x10] sm:$0xf]
        %v486 = vld [vmem:[#allocation2 + $0x14] sm:$0xf]
        %v487 = vld [vmem:[#allocation2 + $0x18] sm:$0xf]
        %v488 = vld [vmem:[#allocation2 + $0x1c] sm:$0xf]
        %v489 = vld [vmem:[#allocation2 + $0x20] sm:$0xf]
        %v490 = vld [vmem:[#allocation2 + $0x24] sm:$0xf]
        %v491 = vld [vmem:[#allocation2 + $0x28] sm:$0xf]
        %v492 = vld [vmem:[#allocation2 + $0x2c] sm:$0xf]
        %v493 = vld [vmem:[#allocation2 + $0x30] sm:$0xf]
        %v494 = vld [vmem:[#allocation2 + $0x34] sm:$0xf]
        %v495 = vld [vmem:[#allocation2 + $0x38] sm:$0xf]
        %v496 = vld [vmem:[#allocation2 + $0x3c] sm:$0xf]
        %v497 = vld [vmem:[#allocation2 + $0x40] sm:$0xf]
        %v498 = vld [vmem:[#allocation2 + $0x44] sm:$0xf]
        %v499 = vld [vmem:[#allocation2 + $0x48] sm:$0xf]
        %v500 = vld [vmem:[#allocation2 + $0x4c] sm:$0xf]
        %v501 = vld [vmem:[#allocation2 + $0x50] sm:$0xf]
        %v502 = vld [vmem:[#allocation2 + $0x54] sm:$0xf]
        %v503 = vld [vmem:[#allocation2 + $0x58] sm:$0xf]
        %v504 = vld [vmem:[#allocation2 + $0x5c] sm:$0xf]
        %v505 = vld [vmem:[#allocation2 + $0x60] sm:$0xf]
        %v506 = vld [vmem:[#allocation2 + $0x64] sm:$0xf]
        %v507 = vld [vmem:[#allocation2 + $0x68] sm:$0xf]
        %v508 = vld [vmem:[#allocation2 + $0x6c] sm:$0xf]
        %v509 = vld [vmem:[#allocation2 + $0x70] sm:$0xf]
        %v510 = vld [vmem:[#allocation2 + $0x74] sm:$0xf]
        %v511 = vld [vmem:[#allocation2 + $0x78] sm:$0xf]
        %v512 = vld [vmem:[#allocation2 + $0x7c] sm:$0xf]
        %v513 = vld [vmem:[%s403] sm:$0xff]
        %v514 = vld [vmem:[%s403 + $0x8] sm:$0xff]
        %v515 = vld [vmem:[#allocation5] sm:$0xff]
        %v516 = vld [vmem:[#allocation5 + $0x8] sm:$0xff]
        %v517 = vld [vmem:[#allocation5 + $0x10] sm:$0xff]
        %v518 = vld [vmem:[#allocation5 + $0x18] sm:$0xff]
        %v519 = vld [vmem:[#allocation5 + $0x20] sm:$0xff]
        %v520 = vld [vmem:[#allocation5 + $0x28] sm:$0xff]
        %v521 = vld [vmem:[#allocation5 + $0x30] sm:$0xff]
        %v522 = vld [vmem:[#allocation5 + $0x38] sm:$0xff]
        %v523 = vld [vmem:[#allocation5 + $0x40] sm:$0xff]
        %v524 = vld [vmem:[#allocation5 + $0x48] sm:$0xff]
        %v525 = vld [vmem:[#allocation5 + $0x50] sm:$0xff]
        %v526 = vld [vmem:[#allocation5 + $0x58] sm:$0xff]
        %v527 = vld [vmem:[#allocation5 + $0x60] sm:$0xff]
        %v528 = vld [vmem:[#allocation5 + $0x68] sm:$0xff]
        %v529 = vld [vmem:[#allocation5 + $0x70] sm:$0xff]
        %v530 = vld [vmem:[#allocation5 + $0x78] sm:$0xff]
        %v531 = vld [vmem:[#allocation5 + $0x80] sm:$0xff]
        %v532 = vld [vmem:[#allocation5 + $0x88] sm:$0xff]
        %v533 = vld [vmem:[#allocation5 + $0x90] sm:$0xff]
        %v534 = vld [vmem:[#allocation5 + $0x98] sm:$0xff]
        %v535 = vld [vmem:[#allocation5 + $0xa0] sm:$0xff]
        %v536 = vld [vmem:[#allocation5 + $0xa8] sm:$0xff]
        %v537 = vld [vmem:[#allocation5 + $0xb0] sm:$0xff]
        %v538 = vld [vmem:[#allocation5 + $0xb8] sm:$0xff]
        %v539 = vld [vmem:[#allocation5 + $0xc0] sm:$0xff]
        %v540 = vld [vmem:[#allocation5 + $0xc8] sm:$0xff]
        %v541 = vld [vmem:[#allocation5 + $0xd0] sm:$0xff]
        %v542 = vld [vmem:[#allocation5 + $0xd8] sm:$0xff]
        %v543 = vld [vmem:[#allocation5 + $0xe0] sm:$0xff]
        %v544 = vld [vmem:[#allocation5 + $0xe8] sm:$0xff]
        %v545 = vld [vmem:[#allocation5 + $0xf0] sm:$0xff]
        %v546 = vld [vmem:[#allocation5 + $0xf8] sm:$0xff]
        %548 = vset.pattern.permute.xlu0 0
        %549 = vperm.xlu0 %548, %v515
        %v550 = vpop.permute.xlu0 %549
        %553 = vset.pattern.permute.xlu0 0
        %554 = vperm.xlu0 %553, %v516
        %v555 = vpop.permute.xlu0 %554
        %558 = vset.pattern.permute.xlu0 0
        %559 = vperm.xlu0 %558, %v517
        %v560 = vpop.permute.xlu0 %559
        %563 = vset.pattern.permute.xlu0 0
        %564 = vperm.xlu0 %563, %v518
        %v565 = vpop.permute.xlu0 %564
        %568 = vset.pattern.permute.xlu0 0
        %569 = vperm.xlu0 %568, %v519
        %v570 = vpop.permute.xlu0 %569
        %573 = vset.pattern.permute.xlu0 0
        %574 = vperm.xlu0 %573, %v520
        %v575 = vpop.permute.xlu0 %574
        %578 = vset.pattern.permute.xlu0 0
        %579 = vperm.xlu0 %578, %v521
        %v580 = vpop.permute.xlu0 %579
        %583 = vset.pattern.permute.xlu0 0
        %584 = vperm.xlu0 %583, %v522
        %v585 = vpop.permute.xlu0 %584
        %588 = vset.pattern.permute.xlu0 0
        %589 = vperm.xlu0 %588, %v523
        %v590 = vpop.permute.xlu0 %589
        %593 = vset.pattern.permute.xlu0 0
        %594 = vperm.xlu0 %593, %v524
        %v595 = vpop.permute.xlu0 %594
        %598 = vset.pattern.permute.xlu0 0
        %599 = vperm.xlu0 %598, %v525
        %v600 = vpop.permute.xlu0 %599
        %603 = vset.pattern.permute.xlu0 0
        %604 = vperm.xlu0 %603, %v526
        %v605 = vpop.permute.xlu0 %604
        %608 = vset.pattern.permute.xlu0 0
        %609 = vperm.xlu0 %608, %v527
        %v610 = vpop.permute.xlu0 %609
        %613 = vset.pattern.permute.xlu0 0
        %614 = vperm.xlu0 %613, %v528
        %v615 = vpop.permute.xlu0 %614
        %618 = vset.pattern.permute.xlu0 0
        %619 = vperm.xlu0 %618, %v529
        %v620 = vpop.permute.xlu0 %619
        %623 = vset.pattern.permute.xlu0 0
        %624 = vperm.xlu0 %623, %v530
        %v625 = vpop.permute.xlu0 %624
        %628 = vset.pattern.permute.xlu0 0
        %629 = vperm.xlu0 %628, %v531
        %v630 = vpop.permute.xlu0 %629
        %633 = vset.pattern.permute.xlu0 0
        %634 = vperm.xlu0 %633, %v532
        %v635 = vpop.permute.xlu0 %634
        %638 = vset.pattern.permute.xlu0 0
        %639 = vperm.xlu0 %638, %v533
        %v640 = vpop.permute.xlu0 %639
        %643 = vset.pattern.permute.xlu0 0
        %644 = vperm.xlu0 %643, %v534
        %v645 = vpop.permute.xlu0 %644
        %648 = vset.pattern.permute.xlu0 0
        %649 = vperm.xlu0 %648, %v535
        %v650 = vpop.permute.xlu0 %649
        %653 = vset.pattern.permute.xlu0 0
        %654 = vperm.xlu0 %653, %v536
        %v655 = vpop.permute.xlu0 %654
        %658 = vset.pattern.permute.xlu0 0
        %659 = vperm.xlu0 %658, %v537
        %v660 = vpop.permute.xlu0 %659
        %663 = vset.pattern.permute.xlu0 0
        %664 = vperm.xlu0 %663, %v538
        %v665 = vpop.permute.xlu0 %664
        %668 = vset.pattern.permute.xlu0 0
        %669 = vperm.xlu0 %668, %v539
        %v670 = vpop.permute.xlu0 %669
        %673 = vset.pattern.permute.xlu0 0
        %674 = vperm.xlu0 %673, %v540
        %v675 = vpop.permute.xlu0 %674
        %678 = vset.pattern.permute.xlu0 0
        %679 = vperm.xlu0 %678, %v541
        %v680 = vpop.permute.xlu0 %679
        %683 = vset.pattern.permute.xlu0 0
        %684 = vperm.xlu0 %683, %v542
        %v685 = vpop.permute.xlu0 %684
        %688 = vset.pattern.permute.xlu0 0
        %689 = vperm.xlu0 %688, %v543
        %v690 = vpop.permute.xlu0 %689
        %693 = vset.pattern.permute.xlu0 0
        %694 = vperm.xlu0 %693, %v544
        %v695 = vpop.permute.xlu0 %694
        %698 = vset.pattern.permute.xlu0 0
        %699 = vperm.xlu0 %698, %v545
        %v700 = vpop.permute.xlu0 %699
        %703 = vset.pattern.permute.xlu0 0
        %704 = vperm.xlu0 %703, %v546
        %v705 = vpop.permute.xlu0 %704
        %v739 = vunpack.c.l.b16 %v481
        %v740 = vunpack.c.l.b16 %v482
        %v741 = vunpack.c.l.b16 %v483
        %v742 = vunpack.c.l.b16 %v484
        %v743 = vunpack.c.l.b16 %v485
        %v744 = vunpack.c.l.b16 %v486
        %v745 = vunpack.c.l.b16 %v487
        %v746 = vunpack.c.l.b16 %v488
        %v747 = vunpack.c.l.b16 %v489
        %v748 = vunpack.c.l.b16 %v490
        %v749 = vunpack.c.l.b16 %v491
        %v750 = vunpack.c.l.b16 %v492
        %v751 = vunpack.c.l.b16 %v493
        %v752 = vunpack.c.l.b16 %v494
        %v753 = vunpack.c.l.b16 %v495
        %v754 = vunpack.c.l.b16 %v496
        %v755 = vunpack.c.l.b16 %v497
        %v756 = vunpack.c.l.b16 %v498
        %v757 = vunpack.c.l.b16 %v499
        %v758 = vunpack.c.l.b16 %v500
        %v759 = vunpack.c.l.b16 %v501
        %v760 = vunpack.c.l.b16 %v502
        %v761 = vunpack.c.l.b16 %v503
        %v762 = vunpack.c.l.b16 %v504
        %v763 = vunpack.c.l.b16 %v505
        %v764 = vunpack.c.l.b16 %v506
        %v765 = vunpack.c.l.b16 %v507
        %v766 = vunpack.c.l.b16 %v508
        %v767 = vunpack.c.l.b16 %v509
        %v768 = vunpack.c.l.b16 %v510
        %v769 = vunpack.c.l.b16 %v511
        %v770 = vunpack.c.l.b16 %v512
        %v771 = vpack.c.b16 %v740, %v739
        %v772 = vpack.c.b16 %v742, %v741
        %v773 = vpack.c.b16 %v744, %v743
        %v774 = vpack.c.b16 %v746, %v745
        %v775 = vpack.c.b16 %v748, %v747
        %v776 = vpack.c.b16 %v750, %v749
        %v777 = vpack.c.b16 %v752, %v751
        %v778 = vpack.c.b16 %v754, %v753
        %v779 = vpack.c.b16 %v756, %v755
        %v780 = vpack.c.b16 %v758, %v757
        %v781 = vpack.c.b16 %v760, %v759
        %v782 = vpack.c.b16 %v762, %v761
        %v783 = vpack.c.b16 %v764, %v763
        %v784 = vpack.c.b16 %v766, %v765
        %v785 = vpack.c.b16 %v768, %v767
        %v786 = vpack.c.b16 %v770, %v769
        %v789 = vunpack.c.l.b16 %v513
        %v790 = vunpack.c.h.b16 %v513
        %v791 = vunpack.c.l.b16 %v514
        %v792 = vunpack.c.h.b16 %v514
        %v793 = vpack.c.b16 %v789, %v789
        %v794 = vpack.c.b16 %v790, %v790
        %v795 = vpack.c.b16 %v791, %v791
        %v796 = vpack.c.b16 %v792, %v792
        %vm797 = vcmask 64512
        %v799 = vsel %vm797, %v771, 0
        %v802 = vsel %vm797, %v772, 0
        %v805 = vsel %vm797, %v773, 0
        %v808 = vsel %vm797, %v774, 0
        %v811 = vsel %vm797, %v775, 0
        %v814 = vsel %vm797, %v776, 0
        %v817 = vsel %vm797, %v777, 0
        %v820 = vsel %vm797, %v778, 0
        %v823 = vsel %vm797, %v779, 0
        %v826 = vsel %vm797, %v780, 0
        %v829 = vsel %vm797, %v781, 0
        %v832 = vsel %vm797, %v782, 0
        %v835 = vsel %vm797, %v783, 0
        %v838 = vsel %vm797, %v784, 0
        %v841 = vsel %vm797, %v785, 0
        %v844 = vsel %vm797, %v786, 0
        %vm846 = vcmask 1043456
        %v848 = vsel %vm846, %v793, 0
        %v851 = vsel %vm846, %v794, 0
        %v854 = vsel %vm846, %v795, 0
        %v857 = vsel %vm846, %v796, 0
        %859 = vmatprep.subr.bf16.mxu0 %v851
        %860 = vmatpush1.bf16.msra.mxu0 %v848
        %861 = vmatprep.subr.bf16.mxu0 0
        %862 = vmatpush1.bf16.msra.mxu0 0
        %863 = vmatprep.subr.bf16.mxu0 0
        %864 = vmatpush1.bf16.msra.mxu0 0
        %865 = vmatprep.subr.bf16.mxu0 0
        %866 = vmatpush1.bf16.msra.mxu0 0
        %867 = vmatprep.subr.bf16.mxu0 0
        %868 = vmatpush1.bf16.msra.mxu0 0
        %869 = vmatprep.subr.bf16.mxu0 0
        %870 = vmatpush1.bf16.msra.mxu0 0
        %871 = vmatprep.subr.bf16.mxu0 0
        %872 = vmatpush1.bf16.msra.mxu0 0
        %873 = vmatprep.subr.bf16.mxu0 0
        %874 = vmatpush1.bf16.msra.mxu0 0
        %875 = vmatprep.subr.bf16.mxu0 0
        %876 = vmatpush1.bf16.msra.mxu0 0
        %877 = vmatprep.subr.bf16.mxu0 0
        %878 = vmatpush1.bf16.msra.mxu0 0
        %879 = vmatprep.subr.bf16.mxu0 0
        %880 = vmatpush1.bf16.msra.mxu0 0
        %881 = vmatprep.subr.bf16.mxu0 0
        %882 = vmatpush1.bf16.msra.mxu0 0
        %883 = vmatprep.subr.bf16.mxu0 0
        %884 = vmatpush1.bf16.msra.mxu0 0
        %885 = vmatprep.subr.bf16.mxu0 0
        %886 = vmatpush1.bf16.msra.mxu0 0
        %887 = vmatprep.subr.bf16.mxu0 0
        %888 = vmatpush1.bf16.msra.mxu0 0
        %889 = vmatprep.subr.bf16.mxu0 0
        %890 = vmatpush1.bf16.msra.mxu0 0
        %891 = vmatprep.mubr.bf16.mxu0 0
        %892 = vmatmul.mubr.bf16.gmra.mrb[0].mxu0 %v799
        %v893 = vpop.f32.mrb[0].mxu0
        %v894 = vadd.f32 %v550, %v893
        %v895 = vpop.f32.mrb[0].mxu0
        %v896 = vadd.f32 %v550, %v895
        %v897 = vpop.f32.mrb[0].mxu0
        %v898 = vadd.f32 %v555, %v897
        %v899 = vpop.f32.mrb[0].mxu0
        %v900 = vadd.f32 %v555, %v899
        %901 = vmatprep.mubr.bf16.mxu0 0
        %902 = vmatmul.mubr.bf16.gmra.mrb[0].mxu0 %v802
        %v903 = vpop.f32.mrb[0].mxu0
        %v904 = vadd.f32 %v560, %v903
        %v905 = vpop.f32.mrb[0].mxu0
        %v906 = vadd.f32 %v560, %v905
        %v907 = vpop.f32.mrb[0].mxu0
        %v908 = vadd.f32 %v565, %v907
        %v909 = vpop.f32.mrb[0].mxu0
        %v910 = vadd.f32 %v565, %v909
        %911 = vmatprep.mubr.bf16.mxu0 0
        %912 = vmatmul.mubr.bf16.gmra.mrb[0].mxu0 %v805
        %v913 = vpop.f32.mrb[0].mxu0
        %v914 = vadd.f32 %v570, %v913
        %v915 = vpop.f32.mrb[0].mxu0
        %v916 = vadd.f32 %v570, %v915
        %v917 = vpop.f32.mrb[0].mxu0
        %v918 = vadd.f32 %v575, %v917
        %v919 = vpop.f32.mrb[0].mxu0
        %v920 = vadd.f32 %v575, %v919
        %921 = vmatprep.mubr.bf16.mxu0 0
        %922 = vmatmul.mubr.bf16.gmra.mrb[0].mxu0 %v808
        %v923 = vpop.f32.mrb[0].mxu0
        %v924 = vadd.f32 %v580, %v923
        %v925 = vpop.f32.mrb[0].mxu0
        %v926 = vadd.f32 %v580, %v925
        %v927 = vpop.f32.mrb[0].mxu0
        %v928 = vadd.f32 %v585, %v927
        %v929 = vpop.f32.mrb[0].mxu0
        %v930 = vadd.f32 %v585, %v929
        %931 = vmatprep.mubr.bf16.mxu0 0
        %932 = vmatmul.mubr.bf16.gmra.mrb[0].mxu0 %v811
        %v933 = vpop.f32.mrb[0].mxu0
        %v934 = vadd.f32 %v590, %v933
        %v935 = vpop.f32.mrb[0].mxu0
        %v936 = vadd.f32 %v590, %v935
        %v937 = vpop.f32.mrb[0].mxu0
        %v938 = vadd.f32 %v595, %v937
        %v939 = vpop.f32.mrb[0].mxu0
        %v940 = vadd.f32 %v595, %v939
        %941 = vmatprep.mubr.bf16.mxu0 0
        %942 = vmatmul.mubr.bf16.gmra.mrb[0].mxu0 %v814
        %v943 = vpop.f32.mrb[0].mxu0
        %v944 = vadd.f32 %v600, %v943
        %v945 = vpop.f32.mrb[0].mxu0
        %v946 = vadd.f32 %v600, %v945
        %v947 = vpop.f32.mrb[0].mxu0
        %v948 = vadd.f32 %v605, %v947
        %v949 = vpop.f32.mrb[0].mxu0
        %v950 = vadd.f32 %v605, %v949
        %951 = vmatprep.mubr.bf16.mxu0 0
        %952 = vmatmul.mubr.bf16.gmra.mrb[0].mxu0 %v817
        %v953 = vpop.f32.mrb[0].mxu0
        %v954 = vadd.f32 %v610, %v953
        %v955 = vpop.f32.mrb[0].mxu0
        %v956 = vadd.f32 %v610, %v955
        %v957 = vpop.f32.mrb[0].mxu0
        %v958 = vadd.f32 %v615, %v957
        %v959 = vpop.f32.mrb[0].mxu0
        %v960 = vadd.f32 %v615, %v959
        %961 = vmatprep.mubr.bf16.mxu0 0
        %962 = vmatmul.mubr.bf16.gmra.mrb[0].mxu0 %v820
        %v963 = vpop.f32.mrb[0].mxu0
        %v964 = vadd.f32 %v620, %v963
        %v965 = vpop.f32.mrb[0].mxu0
        %v966 = vadd.f32 %v620, %v965
        %v967 = vpop.f32.mrb[0].mxu0
        %v968 = vadd.f32 %v625, %v967
        %v969 = vpop.f32.mrb[0].mxu0
        %v970 = vadd.f32 %v625, %v969
        %971 = vmatprep.mubr.bf16.mxu0 0
        %972 = vmatmul.mubr.bf16.gmra.mrb[0].mxu0 %v823
        %v973 = vpop.f32.mrb[0].mxu0
        %v974 = vadd.f32 %v630, %v973
        %v975 = vpop.f32.mrb[0].mxu0
        %v976 = vadd.f32 %v630, %v975
        %v977 = vpop.f32.mrb[0].mxu0
        %v978 = vadd.f32 %v635, %v977
        %v979 = vpop.f32.mrb[0].mxu0
        %v980 = vadd.f32 %v635, %v979
        %981 = vmatprep.mubr.bf16.mxu0 0
        %982 = vmatmul.mubr.bf16.gmra.mrb[0].mxu0 %v826
        %v983 = vpop.f32.mrb[0].mxu0
        %v984 = vadd.f32 %v640, %v983
        %v985 = vpop.f32.mrb[0].mxu0
        %v986 = vadd.f32 %v640, %v985
        %v987 = vpop.f32.mrb[0].mxu0
        %v988 = vadd.f32 %v645, %v987
        %v989 = vpop.f32.mrb[0].mxu0
        %v990 = vadd.f32 %v645, %v989
        %991 = vmatprep.mubr.bf16.mxu0 0
        %992 = vmatmul.mubr.bf16.gmra.mrb[0].mxu0 %v829
        %v993 = vpop.f32.mrb[0].mxu0
        %v994 = vadd.f32 %v650, %v993
        %v995 = vpop.f32.mrb[0].mxu0
        %v996 = vadd.f32 %v650, %v995
        %v997 = vpop.f32.mrb[0].mxu0
        %v998 = vadd.f32 %v655, %v997
        %v999 = vpop.f32.mrb[0].mxu0
        %v1000 = vadd.f32 %v655, %v999
        %1001 = vmatprep.mubr.bf16.mxu0 0
        %1002 = vmatmul.mubr.bf16.gmra.mrb[0].mxu0 %v832
        %v1003 = vpop.f32.mrb[0].mxu0
        %v1004 = vadd.f32 %v660, %v1003
        %v1005 = vpop.f32.mrb[0].mxu0
        %v1006 = vadd.f32 %v660, %v1005
        %v1007 = vpop.f32.mrb[0].mxu0
        %v1008 = vadd.f32 %v665, %v1007
        %v1009 = vpop.f32.mrb[0].mxu0
        %v1010 = vadd.f32 %v665, %v1009
        %1011 = vmatprep.mubr.bf16.mxu0 0
        %1012 = vmatmul.mubr.bf16.gmra.mrb[0].mxu0 %v835
        %v1013 = vpop.f32.mrb[0].mxu0
        %v1014 = vadd.f32 %v670, %v1013
        %v1015 = vpop.f32.mrb[0].mxu0
        %v1016 = vadd.f32 %v670, %v1015
        %v1017 = vpop.f32.mrb[0].mxu0
        %v1018 = vadd.f32 %v675, %v1017
        %v1019 = vpop.f32.mrb[0].mxu0
        %v1020 = vadd.f32 %v675, %v1019
        %1021 = vmatprep.mubr.bf16.mxu0 0
        %1022 = vmatmul.mubr.bf16.gmra.mrb[0].mxu0 %v838
        %v1023 = vpop.f32.mrb[0].mxu0
        %v1024 = vadd.f32 %v680, %v1023
        %v1025 = vpop.f32.mrb[0].mxu0
        %v1026 = vadd.f32 %v680, %v1025
        %v1027 = vpop.f32.mrb[0].mxu0
        %v1028 = vadd.f32 %v685, %v1027
        %v1029 = vpop.f32.mrb[0].mxu0
        %v1030 = vadd.f32 %v685, %v1029
        %1031 = vmatprep.mubr.bf16.mxu0 0
        %1032 = vmatmul.mubr.bf16.gmra.mrb[0].mxu0 %v841
        %v1033 = vpop.f32.mrb[0].mxu0
        %v1034 = vadd.f32 %v690, %v1033
        %v1035 = vpop.f32.mrb[0].mxu0
        %v1036 = vadd.f32 %v690, %v1035
        %v1037 = vpop.f32.mrb[0].mxu0
        %v1038 = vadd.f32 %v695, %v1037
        %v1039 = vpop.f32.mrb[0].mxu0
        %v1040 = vadd.f32 %v695, %v1039
        %1041 = vmatprep.mubr.bf16.mxu0 0
        %1042 = vmatmul.mubr.bf16.gmra.mrb[0].mxu0 %v844
        %v1043 = vpop.f32.mrb[0].mxu0
        %v1044 = vadd.f32 %v700, %v1043
        %v1045 = vpop.f32.mrb[0].mxu0
        %v1046 = vadd.f32 %v700, %v1045
        %v1047 = vpop.f32.mrb[0].mxu0
        %v1048 = vadd.f32 %v705, %v1047
        %v1049 = vpop.f32.mrb[0].mxu0
        %v1050 = vadd.f32 %v705, %v1049
        %1051 = vdwg.mxu0
        %1052 = vmatprep.subr.bf16.mxu0 %v857
        %1053 = vmatpush1.bf16.msra.mxu0 %v854
        %1054 = vmatprep.subr.bf16.mxu0 0
        %1055 = vmatpush1.bf16.msra.mxu0 0
        %1056 = vmatprep.subr.bf16.mxu0 0
        %1057 = vmatpush1.bf16.msra.mxu0 0
        %1058 = vmatprep.subr.bf16.mxu0 0
        %1059 = vmatpush1.bf16.msra.mxu0 0
        %1060 = vmatprep.subr.bf16.mxu0 0
        %1061 = vmatpush1.bf16.msra.mxu0 0
        %1062 = vmatprep.subr.bf16.mxu0 0
        %1063 = vmatpush1.bf16.msra.mxu0 0
        %1064 = vmatprep.subr.bf16.mxu0 0
        %1065 = vmatpush1.bf16.msra.mxu0 0
        %1066 = vmatprep.subr.bf16.mxu0 0
        %1067 = vmatpush1.bf16.msra.mxu0 0
        %1068 = vmatprep.subr.bf16.mxu0 0
        %1069 = vmatpush1.bf16.msra.mxu0 0
        %1070 = vmatprep.subr.bf16.mxu0 0
        %1071 = vmatpush1.bf16.msra.mxu0 0
        %1072 = vmatprep.subr.bf16.mxu0 0
        %1073 = vmatpush1.bf16.msra.mxu0 0
        %1074 = vmatprep.subr.bf16.mxu0 0
        %1075 = vmatpush1.bf16.msra.mxu0 0
        %1076 = vmatprep.subr.bf16.mxu0 0
        %1077 = vmatpush1.bf16.msra.mxu0 0
        %1078 = vmatprep.subr.bf16.mxu0 0
        %1079 = vmatpush1.bf16.msra.mxu0 0
        %1080 = vmatprep.subr.bf16.mxu0 0
        %1081 = vmatpush1.bf16.msra.mxu0 0
        %1082 = vmatprep.subr.bf16.mxu0 0
        %1083 = vmatpush1.bf16.msra.mxu0 0
        %1084 = vmatprep.mubr.bf16.mxu0 0
        %1085 = vmatmul.mubr.bf16.gmra.mrb[0].mxu0 %v799
        %v1086 = vpop.f32.mrb[0].mxu0
        %v1087 = vadd.f32 %v550, %v1086
        %v1088 = vpop.f32.mrb[0].mxu0
        %v1089 = vadd.f32 %v550, %v1088
        %v1090 = vpop.f32.mrb[0].mxu0
        %v1091 = vadd.f32 %v555, %v1090
        %v1092 = vpop.f32.mrb[0].mxu0
        %v1093 = vadd.f32 %v555, %v1092
        %1094 = vmatprep.mubr.bf16.mxu0 0
        %1095 = vmatmul.mubr.bf16.gmra.mrb[0].mxu0 %v802
        %v1096 = vpop.f32.mrb[0].mxu0
        %v1097 = vadd.f32 %v560, %v1096
        %v1098 = vpop.f32.mrb[0].mxu0
        %v1099 = vadd.f32 %v560, %v1098
        %v1100 = vpop.f32.mrb[0].mxu0
        %v1101 = vadd.f32 %v565, %v1100
        %v1102 = vpop.f32.mrb[0].mxu0
        %v1103 = vadd.f32 %v565, %v1102
        %1104 = vmatprep.mubr.bf16.mxu0 0
        %1105 = vmatmul.mubr.bf16.gmra.mrb[0].mxu0 %v805
        %v1106 = vpop.f32.mrb[0].mxu0
        %v1107 = vadd.f32 %v570, %v1106
        %v1108 = vpop.f32.mrb[0].mxu0
        %v1109 = vadd.f32 %v570, %v1108
        %v1110 = vpop.f32.mrb[0].mxu0
        %v1111 = vadd.f32 %v575, %v1110
        %v1112 = vpop.f32.mrb[0].mxu0
        %v1113 = vadd.f32 %v575, %v1112
        %1114 = vmatprep.mubr.bf16.mxu0 0
        %1115 = vmatmul.mubr.bf16.gmra.mrb[0].mxu0 %v808
        %v1116 = vpop.f32.mrb[0].mxu0
        %v1117 = vadd.f32 %v580, %v1116
        %v1118 = vpop.f32.mrb[0].mxu0
        %v1119 = vadd.f32 %v580, %v1118
        %v1120 = vpop.f32.mrb[0].mxu0
        %v1121 = vadd.f32 %v585, %v1120
        %v1122 = vpop.f32.mrb[0].mxu0
        %v1123 = vadd.f32 %v585, %v1122
        %1124 = vmatprep.mubr.bf16.mxu0 0
        %1125 = vmatmul.mubr.bf16.gmra.mrb[0].mxu0 %v811
        %v1126 = vpop.f32.mrb[0].mxu0
        %v1127 = vadd.f32 %v590, %v1126
        %v1128 = vpop.f32.mrb[0].mxu0
        %v1129 = vadd.f32 %v590, %v1128
        %v1130 = vpop.f32.mrb[0].mxu0
        %v1131 = vadd.f32 %v595, %v1130
        %v1132 = vpop.f32.mrb[0].mxu0
        %v1133 = vadd.f32 %v595, %v1132
        %1134 = vmatprep.mubr.bf16.mxu0 0
        %1135 = vmatmul.mubr.bf16.gmra.mrb[0].mxu0 %v814
        %v1136 = vpop.f32.mrb[0].mxu0
        %v1137 = vadd.f32 %v600, %v1136
        %v1138 = vpop.f32.mrb[0].mxu0
        %v1139 = vadd.f32 %v600, %v1138
        %v1140 = vpop.f32.mrb[0].mxu0
        %v1141 = vadd.f32 %v605, %v1140
        %v1142 = vpop.f32.mrb[0].mxu0
        %v1143 = vadd.f32 %v605, %v1142
        %1144 = vmatprep.mubr.bf16.mxu0 0
        %1145 = vmatmul.mubr.bf16.gmra.mrb[0].mxu0 %v817
        %v1146 = vpop.f32.mrb[0].mxu0
        %v1147 = vadd.f32 %v610, %v1146
        %v1148 = vpop.f32.mrb[0].mxu0
        %v1149 = vadd.f32 %v610, %v1148
        %v1150 = vpop.f32.mrb[0].mxu0
        %v1151 = vadd.f32 %v615, %v1150
        %v1152 = vpop.f32.mrb[0].mxu0
        %v1153 = vadd.f32 %v615, %v1152
        %1154 = vmatprep.mubr.bf16.mxu0 0
        %1155 = vmatmul.mubr.bf16.gmra.mrb[0].mxu0 %v820
        %v1156 = vpop.f32.mrb[0].mxu0
        %v1157 = vadd.f32 %v620, %v1156
        %v1158 = vpop.f32.mrb[0].mxu0
        %v1159 = vadd.f32 %v620, %v1158
        %v1160 = vpop.f32.mrb[0].mxu0
        %v1161 = vadd.f32 %v625, %v1160
        %v1162 = vpop.f32.mrb[0].mxu0
        %v1163 = vadd.f32 %v625, %v1162
        %1164 = vmatprep.mubr.bf16.mxu0 0
        %1165 = vmatmul.mubr.bf16.gmra.mrb[0].mxu0 %v823
        %v1166 = vpop.f32.mrb[0].mxu0
        %v1167 = vadd.f32 %v630, %v1166
        %v1168 = vpop.f32.mrb[0].mxu0
        %v1169 = vadd.f32 %v630, %v1168
        %v1170 = vpop.f32.mrb[0].mxu0
        %v1171 = vadd.f32 %v635, %v1170
        %v1172 = vpop.f32.mrb[0].mxu0
        %v1173 = vadd.f32 %v635, %v1172
        %1174 = vmatprep.mubr.bf16.mxu0 0
        %1175 = vmatmul.mubr.bf16.gmra.mrb[0].mxu0 %v826
        %v1176 = vpop.f32.mrb[0].mxu0
        %v1177 = vadd.f32 %v640, %v1176
        %v1178 = vpop.f32.mrb[0].mxu0
        %v1179 = vadd.f32 %v640, %v1178
        %v1180 = vpop.f32.mrb[0].mxu0
        %v1181 = vadd.f32 %v645, %v1180
        %v1182 = vpop.f32.mrb[0].mxu0
        %v1183 = vadd.f32 %v645, %v1182
        %1184 = vmatprep.mubr.bf16.mxu0 0
        %1185 = vmatmul.mubr.bf16.gmra.mrb[0].mxu0 %v829
        %v1186 = vpop.f32.mrb[0].mxu0
        %v1187 = vadd.f32 %v650, %v1186
        %v1188 = vpop.f32.mrb[0].mxu0
        %v1189 = vadd.f32 %v650, %v1188
        %v1190 = vpop.f32.mrb[0].mxu0
        %v1191 = vadd.f32 %v655, %v1190
        %v1192 = vpop.f32.mrb[0].mxu0
        %v1193 = vadd.f32 %v655, %v1192
        %1194 = vmatprep.mubr.bf16.mxu0 0
        %1195 = vmatmul.mubr.bf16.gmra.mrb[0].mxu0 %v832
        %v1196 = vpop.f32.mrb[0].mxu0
        %v1197 = vadd.f32 %v660, %v1196
        %v1198 = vpop.f32.mrb[0].mxu0
        %v1199 = vadd.f32 %v660, %v1198
        %v1200 = vpop.f32.mrb[0].mxu0
        %v1201 = vadd.f32 %v665, %v1200
        %v1202 = vpop.f32.mrb[0].mxu0
        %v1203 = vadd.f32 %v665, %v1202
        %1204 = vmatprep.mubr.bf16.mxu0 0
        %1205 = vmatmul.mubr.bf16.gmra.mrb[0].mxu0 %v835
        %v1206 = vpop.f32.mrb[0].mxu0
        %v1207 = vadd.f32 %v670, %v1206
        %v1208 = vpop.f32.mrb[0].mxu0
        %v1209 = vadd.f32 %v670, %v1208
        %v1210 = vpop.f32.mrb[0].mxu0
        %v1211 = vadd.f32 %v675, %v1210
        %v1212 = vpop.f32.mrb[0].mxu0
        %v1213 = vadd.f32 %v675, %v1212
        %1214 = vmatprep.mubr.bf16.mxu0 0
        %1215 = vmatmul.mubr.bf16.gmra.mrb[0].mxu0 %v838
        %v1216 = vpop.f32.mrb[0].mxu0
        %v1217 = vadd.f32 %v680, %v1216
        %v1218 = vpop.f32.mrb[0].mxu0
        %v1219 = vadd.f32 %v680, %v1218
        %v1220 = vpop.f32.mrb[0].mxu0
        %v1221 = vadd.f32 %v685, %v1220
        %v1222 = vpop.f32.mrb[0].mxu0
        %v1223 = vadd.f32 %v685, %v1222
        %1224 = vmatprep.mubr.bf16.mxu0 0
        %1225 = vmatmul.mubr.bf16.gmra.mrb[0].mxu0 %v841
        %v1226 = vpop.f32.mrb[0].mxu0
        %v1227 = vadd.f32 %v690, %v1226
        %v1228 = vpop.f32.mrb[0].mxu0
        %v1229 = vadd.f32 %v690, %v1228
        %v1230 = vpop.f32.mrb[0].mxu0
        %v1231 = vadd.f32 %v695, %v1230
        %v1232 = vpop.f32.mrb[0].mxu0
        %v1233 = vadd.f32 %v695, %v1232
        %1234 = vmatprep.mubr.bf16.mxu0 0
        %1235 = vmatmul.mubr.bf16.gmra.mrb[0].mxu0 %v844
        %v1236 = vpop.f32.mrb[0].mxu0
        %v1237 = vadd.f32 %v700, %v1236
        %v1238 = vpop.f32.mrb[0].mxu0
        %v1239 = vadd.f32 %v700, %v1238
        %v1240 = vpop.f32.mrb[0].mxu0
        %v1241 = vadd.f32 %v705, %v1240
        %v1242 = vpop.f32.mrb[0].mxu0
        %v1243 = vadd.f32 %v705, %v1242
        %1244 = vdwg.mxu0
        %v1245 = vpack.c.bf16 %v898, %v894
        %v1246 = vpack.c.bf16 %v900, %v896
        %v1247 = vpack.c.bf16 %v1091, %v1087
        %v1248 = vpack.c.bf16 %v1093, %v1089
        %v1249 = vpack.c.bf16 %v908, %v904
        %v1250 = vpack.c.bf16 %v910, %v906
        %v1251 = vpack.c.bf16 %v1101, %v1097
        %v1252 = vpack.c.bf16 %v1103, %v1099
        %v1253 = vpack.c.bf16 %v918, %v914
        %v1254 = vpack.c.bf16 %v920, %v916
        %v1255 = vpack.c.bf16 %v1111, %v1107
        %v1256 = vpack.c.bf16 %v1113, %v1109
        %v1257 = vpack.c.bf16 %v928, %v924
        %v1258 = vpack.c.bf16 %v930, %v926
        %v1259 = vpack.c.bf16 %v1121, %v1117
        %v1260 = vpack.c.bf16 %v1123, %v1119
        %v1261 = vpack.c.bf16 %v938, %v934
        %v1262 = vpack.c.bf16 %v940, %v936
        %v1263 = vpack.c.bf16 %v1131, %v1127
        %v1264 = vpack.c.bf16 %v1133, %v1129
        %v1265 = vpack.c.bf16 %v948, %v944
        %v1266 = vpack.c.bf16 %v950, %v946
        %v1267 = vpack.c.bf16 %v1141, %v1137
        %v1268 = vpack.c.bf16 %v1143, %v1139
        %v1269 = vpack.c.bf16 %v958, %v954
        %v1270 = vpack.c.bf16 %v960, %v956
        %v1271 = vpack.c.bf16 %v1151, %v1147
        %v1272 = vpack.c.bf16 %v1153, %v1149
        %v1273 = vpack.c.bf16 %v968, %v964
        %v1274 = vpack.c.bf16 %v970, %v966
        %v1275 = vpack.c.bf16 %v1161, %v1157
        %v1276 = vpack.c.bf16 %v1163, %v1159
        %v1277 = vpack.c.bf16 %v978, %v974
        %v1278 = vpack.c.bf16 %v980, %v976
        %v1279 = vpack.c.bf16 %v1171, %v1167
        %v1280 = vpack.c.bf16 %v1173, %v1169
        %v1281 = vpack.c.bf16 %v988, %v984
        %v1282 = vpack.c.bf16 %v990, %v986
        %v1283 = vpack.c.bf16 %v1181, %v1177
        %v1284 = vpack.c.bf16 %v1183, %v1179
        %v1285 = vpack.c.bf16 %v998, %v994
        %v1286 = vpack.c.bf16 %v1000, %v996
        %v1287 = vpack.c.bf16 %v1191, %v1187
        %v1288 = vpack.c.bf16 %v1193, %v1189
        %v1289 = vpack.c.bf16 %v1008, %v1004
        %v1290 = vpack.c.bf16 %v1010, %v1006
        %v1291 = vpack.c.bf16 %v1201, %v1197
        %v1292 = vpack.c.bf16 %v1203, %v1199
        %v1293 = vpack.c.bf16 %v1018, %v1014
        %v1294 = vpack.c.bf16 %v1020, %v1016
        %v1295 = vpack.c.bf16 %v1211, %v1207
        %v1296 = vpack.c.bf16 %v1213, %v1209
        %v1297 = vpack.c.bf16 %v1028, %v1024
        %v1298 = vpack.c.bf16 %v1030, %v1026
        %v1299 = vpack.c.bf16 %v1221, %v1217
        %v1300 = vpack.c.bf16 %v1223, %v1219
        %v1301 = vpack.c.bf16 %v1038, %v1034
        %v1302 = vpack.c.bf16 %v1040, %v1036
        %v1303 = vpack.c.bf16 %v1231, %v1227
        %v1304 = vpack.c.bf16 %v1233, %v1229
        %v1305 = vpack.c.bf16 %v1048, %v1044
        %v1306 = vpack.c.bf16 %v1050, %v1046
        %v1307 = vpack.c.bf16 %v1241, %v1237
        %v1308 = vpack.c.bf16 %v1243, %v1239
        %v1373 = vunpack.c.l.b16 %v1245
        %v1374 = vunpack.c.l.b16 %v1246
        %v1375 = vunpack.c.l.b16 %v1247
        %v1376 = vunpack.c.l.b16 %v1248
        %v1377 = vunpack.c.h.b16 %v1245
        %v1378 = vunpack.c.h.b16 %v1246
        %v1379 = vunpack.c.h.b16 %v1247
        %v1380 = vunpack.c.h.b16 %v1248
        %v1381 = vunpack.c.l.b16 %v1249
        %v1382 = vunpack.c.l.b16 %v1250
        %v1383 = vunpack.c.l.b16 %v1251
        %v1384 = vunpack.c.l.b16 %v1252
        %v1385 = vunpack.c.h.b16 %v1249
        %v1386 = vunpack.c.h.b16 %v1250
        %v1387 = vunpack.c.h.b16 %v1251
        %v1388 = vunpack.c.h.b16 %v1252
        %v1389 = vunpack.c.l.b16 %v1253
        %v1390 = vunpack.c.l.b16 %v1254
        %v1391 = vunpack.c.l.b16 %v1255
        %v1392 = vunpack.c.l.b16 %v1256
        %v1393 = vunpack.c.h.b16 %v1253
        %v1394 = vunpack.c.h.b16 %v1254
        %v1395 = vunpack.c.h.b16 %v1255
        %v1396 = vunpack.c.h.b16 %v1256
        %v1397 = vunpack.c.l.b16 %v1257
        %v1398 = vunpack.c.l.b16 %v1258
        %v1399 = vunpack.c.l.b16 %v1259
        %v1400 = vunpack.c.l.b16 %v1260
        %v1401 = vunpack.c.h.b16 %v1257
        %v1402 = vunpack.c.h.b16 %v1258
        %v1403 = vunpack.c.h.b16 %v1259
        %v1404 = vunpack.c.h.b16 %v1260
        %v1405 = vunpack.c.l.b16 %v1261
        %v1406 = vunpack.c.l.b16 %v1262
        %v1407 = vunpack.c.l.b16 %v1263
        %v1408 = vunpack.c.l.b16 %v1264
        %v1409 = vunpack.c.h.b16 %v1261
        %v1410 = vunpack.c.h.b16 %v1262
        %v1411 = vunpack.c.h.b16 %v1263
        %v1412 = vunpack.c.h.b16 %v1264
        %v1413 = vunpack.c.l.b16 %v1265
        %v1414 = vunpack.c.l.b16 %v1266
        %v1415 = vunpack.c.l.b16 %v1267
        %v1416 = vunpack.c.l.b16 %v1268
        %v1417 = vunpack.c.h.b16 %v1265
        %v1418 = vunpack.c.h.b16 %v1266
        %v1419 = vunpack.c.h.b16 %v1267
        %v1420 = vunpack.c.h.b16 %v1268
        %v1421 = vunpack.c.l.b16 %v1269
        %v1422 = vunpack.c.l.b16 %v1270
        %v1423 = vunpack.c.l.b16 %v1271
        %v1424 = vunpack.c.l.b16 %v1272
        %v1425 = vunpack.c.h.b16 %v1269
        %v1426 = vunpack.c.h.b16 %v1270
        %v1427 = vunpack.c.h.b16 %v1271
        %v1428 = vunpack.c.h.b16 %v1272
        %v1429 = vunpack.c.l.b16 %v1273
        %v1430 = vunpack.c.l.b16 %v1274
        %v1431 = vunpack.c.l.b16 %v1275
        %v1432 = vunpack.c.l.b16 %v1276
        %v1433 = vunpack.c.h.b16 %v1273
        %v1434 = vunpack.c.h.b16 %v1274
        %v1435 = vunpack.c.h.b16 %v1275
        %v1436 = vunpack.c.h.b16 %v1276
        %v1437 = vunpack.c.l.b16 %v1277
        %v1438 = vunpack.c.l.b16 %v1278
        %v1439 = vunpack.c.l.b16 %v1279
        %v1440 = vunpack.c.l.b16 %v1280
        %v1441 = vunpack.c.h.b16 %v1277
        %v1442 = vunpack.c.h.b16 %v1278
        %v1443 = vunpack.c.h.b16 %v1279
        %v1444 = vunpack.c.h.b16 %v1280
        %v1445 = vunpack.c.l.b16 %v1281
        %v1446 = vunpack.c.l.b16 %v1282
        %v1447 = vunpack.c.l.b16 %v1283
        %v1448 = vunpack.c.l.b16 %v1284
        %v1449 = vunpack.c.h.b16 %v1281
        %v1450 = vunpack.c.h.b16 %v1282
        %v1451 = vunpack.c.h.b16 %v1283
        %v1452 = vunpack.c.h.b16 %v1284
        %v1453 = vunpack.c.l.b16 %v1285
        %v1454 = vunpack.c.l.b16 %v1286
        %v1455 = vunpack.c.l.b16 %v1287
        %v1456 = vunpack.c.l.b16 %v1288
        %v1457 = vunpack.c.h.b16 %v1285
        %v1458 = vunpack.c.h.b16 %v1286
        %v1459 = vunpack.c.h.b16 %v1287
        %v1460 = vunpack.c.h.b16 %v1288
        %v1461 = vunpack.c.l.b16 %v1289
        %v1462 = vunpack.c.l.b16 %v1290
        %v1463 = vunpack.c.l.b16 %v1291
        %v1464 = vunpack.c.l.b16 %v1292
        %v1465 = vunpack.c.h.b16 %v1289
        %v1466 = vunpack.c.h.b16 %v1290
        %v1467 = vunpack.c.h.b16 %v1291
        %v1468 = vunpack.c.h.b16 %v1292
        %v1469 = vunpack.c.l.b16 %v1293
        %v1470 = vunpack.c.l.b16 %v1294
        %v1471 = vunpack.c.l.b16 %v1295
        %v1472 = vunpack.c.l.b16 %v1296
        %v1473 = vunpack.c.h.b16 %v1293
        %v1474 = vunpack.c.h.b16 %v1294
        %v1475 = vunpack.c.h.b16 %v1295
        %v1476 = vunpack.c.h.b16 %v1296
        %v1477 = vunpack.c.l.b16 %v1297
        %v1478 = vunpack.c.l.b16 %v1298
        %v1479 = vunpack.c.l.b16 %v1299
        %v1480 = vunpack.c.l.b16 %v1300
        %v1481 = vunpack.c.h.b16 %v1297
        %v1482 = vunpack.c.h.b16 %v1298
        %v1483 = vunpack.c.h.b16 %v1299
        %v1484 = vunpack.c.h.b16 %v1300
        %v1485 = vunpack.c.l.b16 %v1301
        %v1486 = vunpack.c.l.b16 %v1302
        %v1487 = vunpack.c.l.b16 %v1303
        %v1488 = vunpack.c.l.b16 %v1304
        %v1489 = vunpack.c.h.b16 %v1301
        %v1490 = vunpack.c.h.b16 %v1302
        %v1491 = vunpack.c.h.b16 %v1303
        %v1492 = vunpack.c.h.b16 %v1304
        %v1493 = vunpack.c.l.b16 %v1305
        %v1494 = vunpack.c.l.b16 %v1306
        %v1495 = vunpack.c.l.b16 %v1307
        %v1496 = vunpack.c.l.b16 %v1308
        %v1497 = vunpack.c.h.b16 %v1305
        %v1498 = vunpack.c.h.b16 %v1306
        %v1499 = vunpack.c.h.b16 %v1307
        %v1500 = vunpack.c.h.b16 %v1308
        %v1501 = vpack.c.b16 %v1374, %v1373
        %v1502 = vpack.c.b16 %v1376, %v1375
        %v1503 = vpack.c.b16 %v1378, %v1377
        %v1504 = vpack.c.b16 %v1380, %v1379
        %v1505 = vpack.c.b16 %v1382, %v1381
        %v1506 = vpack.c.b16 %v1384, %v1383
        %v1507 = vpack.c.b16 %v1386, %v1385
        %v1508 = vpack.c.b16 %v1388, %v1387
        %v1509 = vpack.c.b16 %v1390, %v1389
        %v1510 = vpack.c.b16 %v1392, %v1391
        %v1511 = vpack.c.b16 %v1394, %v1393
        %v1512 = vpack.c.b16 %v1396, %v1395
        %v1513 = vpack.c.b16 %v1398, %v1397
        %v1514 = vpack.c.b16 %v1400, %v1399
        %v1515 = vpack.c.b16 %v1402, %v1401
        %v1516 = vpack.c.b16 %v1404, %v1403
        %v1517 = vpack.c.b16 %v1406, %v1405
        %v1518 = vpack.c.b16 %v1408, %v1407
        %v1519 = vpack.c.b16 %v1410, %v1409
        %v1520 = vpack.c.b16 %v1412, %v1411
        %v1521 = vpack.c.b16 %v1414, %v1413
        %v1522 = vpack.c.b16 %v1416, %v1415
        %v1523 = vpack.c.b16 %v1418, %v1417
        %v1524 = vpack.c.b16 %v1420, %v1419
        %v1525 = vpack.c.b16 %v1422, %v1421
        %v1526 = vpack.c.b16 %v1424, %v1423
        %v1527 = vpack.c.b16 %v1426, %v1425
        %v1528 = vpack.c.b16 %v1428, %v1427
        %v1529 = vpack.c.b16 %v1430, %v1429
        %v1530 = vpack.c.b16 %v1432, %v1431
        %v1531 = vpack.c.b16 %v1434, %v1433
        %v1532 = vpack.c.b16 %v1436, %v1435
        %v1533 = vpack.c.b16 %v1438, %v1437
        %v1534 = vpack.c.b16 %v1440, %v1439
        %v1535 = vpack.c.b16 %v1442, %v1441
        %v1536 = vpack.c.b16 %v1444, %v1443
        %v1537 = vpack.c.b16 %v1446, %v1445
        %v1538 = vpack.c.b16 %v1448, %v1447
        %v1539 = vpack.c.b16 %v1450, %v1449
        %v1540 = vpack.c.b16 %v1452, %v1451
        %v1541 = vpack.c.b16 %v1454, %v1453
        %v1542 = vpack.c.b16 %v1456, %v1455
        %v1543 = vpack.c.b16 %v1458, %v1457
        %v1544 = vpack.c.b16 %v1460, %v1459
        %v1545 = vpack.c.b16 %v1462, %v1461
        %v1546 = vpack.c.b16 %v1464, %v1463
        %v1547 = vpack.c.b16 %v1466, %v1465
        %v1548 = vpack.c.b16 %v1468, %v1467
        %v1549 = vpack.c.b16 %v1470, %v1469
        %v1550 = vpack.c.b16 %v1472, %v1471
        %v1551 = vpack.c.b16 %v1474, %v1473
        %v1552 = vpack.c.b16 %v1476, %v1475
        %v1553 = vpack.c.b16 %v1478, %v1477
        %v1554 = vpack.c.b16 %v1480, %v1479
        %v1555 = vpack.c.b16 %v1482, %v1481
        %v1556 = vpack.c.b16 %v1484, %v1483
        %v1557 = vpack.c.b16 %v1486, %v1485
        %v1558 = vpack.c.b16 %v1488, %v1487
        %v1559 = vpack.c.b16 %v1490, %v1489
        %v1560 = vpack.c.b16 %v1492, %v1491
        %v1561 = vpack.c.b16 %v1494, %v1493
        %v1562 = vpack.c.b16 %v1496, %v1495
        %v1563 = vpack.c.b16 %v1498, %v1497
        %v1564 = vpack.c.b16 %v1500, %v1499
        %1629 = vst [vmem:[%s463] sm:$0xff] %v1501
        %1630 = vst [vmem:[%s463 + $0x8] sm:$0xff] %v1502
        %1631 = vst [vmem:[%s463 + $0x10] sm:$0xff] %v1503
        %1632 = vst [vmem:[%s463 + $0x18] sm:$0xff] %v1504
        %1633 = vst [vmem:[%s463 + $0x20] sm:$0xff] %v1505
        %1634 = vst [vmem:[%s463 + $0x28] sm:$0xff] %v1506
        %1635 = vst [vmem:[%s463 + $0x30] sm:$0xff] %v1507
        %1636 = vst [vmem:[%s463 + $0x38] sm:$0xff] %v1508
        %1637 = vst [vmem:[%s463 + $0x40] sm:$0xff] %v1509
        %1638 = vst [vmem:[%s463 + $0x48] sm:$0xff] %v1510
        %1639 = vst [vmem:[%s463 + $0x50] sm:$0xff] %v1511
        %1640 = vst [vmem:[%s463 + $0x58] sm:$0xff] %v1512
        %1641 = vst [vmem:[%s463 + $0x60] sm:$0xff] %v1513
        %1642 = vst [vmem:[%s463 + $0x68] sm:$0xff] %v1514
        %1643 = vst [vmem:[%s463 + $0x70] sm:$0xff] %v1515
        %1644 = vst [vmem:[%s463 + $0x78] sm:$0xff] %v1516
        %1645 = vst [vmem:[%s463 + $0x80] sm:$0xff] %v1517
        %1646 = vst [vmem:[%s463 + $0x88] sm:$0xff] %v1518
        %1647 = vst [vmem:[%s463 + $0x90] sm:$0xff] %v1519
        %1648 = vst [vmem:[%s463 + $0x98] sm:$0xff] %v1520
        %1649 = vst [vmem:[%s463 + $0xa0] sm:$0xff] %v1521
        %1650 = vst [vmem:[%s463 + $0xa8] sm:$0xff] %v1522
        %1651 = vst [vmem:[%s463 + $0xb0] sm:$0xff] %v1523
        %1652 = vst [vmem:[%s463 + $0xb8] sm:$0xff] %v1524
        %1653 = vst [vmem:[%s463 + $0xc0] sm:$0xff] %v1525
        %1654 = vst [vmem:[%s463 + $0xc8] sm:$0xff] %v1526
        %1655 = vst [vmem:[%s463 + $0xd0] sm:$0xff] %v1527
        %1656 = vst [vmem:[%s463 + $0xd8] sm:$0xff] %v1528
        %1657 = vst [vmem:[%s463 + $0xe0] sm:$0xff] %v1529
        %1658 = vst [vmem:[%s463 + $0xe8] sm:$0xff] %v1530
        %1659 = vst [vmem:[%s463 + $0xf0] sm:$0xff] %v1531
        %1660 = vst [vmem:[%s463 + $0xf8] sm:$0xff] %v1532
        %1661 = vst [vmem:[%s463 + $0x100] sm:$0xff] %v1533
        %1662 = vst [vmem:[%s463 + $0x108] sm:$0xff] %v1534
        %1663 = vst [vmem:[%s463 + $0x110] sm:$0xff] %v1535
        %1664 = vst [vmem:[%s463 + $0x118] sm:$0xff] %v1536
        %1665 = vst [vmem:[%s463 + $0x120] sm:$0xff] %v1537
        %1666 = vst [vmem:[%s463 + $0x128] sm:$0xff] %v1538
        %1667 = vst [vmem:[%s463 + $0x130] sm:$0xff] %v1539
        %1668 = vst [vmem:[%s463 + $0x138] sm:$0xff] %v1540
        %1669 = vst [vmem:[%s463 + $0x140] sm:$0xff] %v1541
        %1670 = vst [vmem:[%s463 + $0x148] sm:$0xff] %v1542
        %1671 = vst [vmem:[%s463 + $0x150] sm:$0xff] %v1543
        %1672 = vst [vmem:[%s463 + $0x158] sm:$0xff] %v1544
        %1673 = vst [vmem:[%s463 + $0x160] sm:$0xff] %v1545
        %1674 = vst [vmem:[%s463 + $0x168] sm:$0xff] %v1546
        %1675 = vst [vmem:[%s463 + $0x170] sm:$0xff] %v1547
        %1676 = vst [vmem:[%s463 + $0x178] sm:$0xff] %v1548
        %1677 = vst [vmem:[%s463 + $0x180] sm:$0xff] %v1549
        %1678 = vst [vmem:[%s463 + $0x188] sm:$0xff] %v1550
        %1679 = vst [vmem:[%s463 + $0x190] sm:$0xff] %v1551
        %1680 = vst [vmem:[%s463 + $0x198] sm:$0xff] %v1552
        %1681 = vst [vmem:[%s463 + $0x1a0] sm:$0xff] %v1553
        %1682 = vst [vmem:[%s463 + $0x1a8] sm:$0xff] %v1554
        %1683 = vst [vmem:[%s463 + $0x1b0] sm:$0xff] %v1555
        %1684 = vst [vmem:[%s463 + $0x1b8] sm:$0xff] %v1556
        %1685 = vst [vmem:[%s463 + $0x1c0] sm:$0xff] %v1557
        %1686 = vst [vmem:[%s463 + $0x1c8] sm:$0xff] %v1558
        %1687 = vst [vmem:[%s463 + $0x1d0] sm:$0xff] %v1559
        %1688 = vst [vmem:[%s463 + $0x1d8] sm:$0xff] %v1560
        %1689 = vst [vmem:[%s463 + $0x1e0] sm:$0xff] %v1561
        %1690 = vst [vmem:[%s463 + $0x1e8] sm:$0xff] %v1562
        %1691 = vst [vmem:[%s463 + $0x1f0] sm:$0xff] %v1563
        %1692 = vst [vmem:[%s463 + $0x1f8] sm:$0xff] %v1564
        %v1693 = vxor.u32 %v1245, 2147516416
        %v1694 = vxor.u32 %v1246, 2147516416
        %v1695 = vxor.u32 %v1247, 2147516416
        %v1696 = vxor.u32 %v1248, 2147516416
        %v1697 = vxor.u32 %v1249, 2147516416
        %v1698 = vxor.u32 %v1250, 2147516416
        %v1699 = vxor.u32 %v1251, 2147516416
        %v1700 = vxor.u32 %v1252, 2147516416
        %v1701 = vxor.u32 %v1253, 2147516416
        %v1702 = vxor.u32 %v1254, 2147516416
        %v1703 = vxor.u32 %v1255, 2147516416
        %v1704 = vxor.u32 %v1256, 2147516416
        %v1705 = vxor.u32 %v1257, 2147516416
        %v1706 = vxor.u32 %v1258, 2147516416
        %v1707 = vxor.u32 %v1259, 2147516416
        %v1708 = vxor.u32 %v1260, 2147516416
        %v1709 = vxor.u32 %v1261, 2147516416
        %v1710 = vxor.u32 %v1262, 2147516416
        %v1711 = vxor.u32 %v1263, 2147516416
        %v1712 = vxor.u32 %v1264, 2147516416
        %v1713 = vxor.u32 %v1265, 2147516416
        %v1714 = vxor.u32 %v1266, 2147516416
        %v1715 = vxor.u32 %v1267, 2147516416
        %v1716 = vxor.u32 %v1268, 2147516416
        %v1717 = vxor.u32 %v1269, 2147516416
        %v1718 = vxor.u32 %v1270, 2147516416
        %v1719 = vxor.u32 %v1271, 2147516416
        %v1720 = vxor.u32 %v1272, 2147516416
        %v1721 = vxor.u32 %v1273, 2147516416
        %v1722 = vxor.u32 %v1274, 2147516416
        %v1723 = vxor.u32 %v1275, 2147516416
        %v1724 = vxor.u32 %v1276, 2147516416
        %v1725 = vxor.u32 %v1277, 2147516416
        %v1726 = vxor.u32 %v1278, 2147516416
        %v1727 = vxor.u32 %v1279, 2147516416
        %v1728 = vxor.u32 %v1280, 2147516416
        %v1729 = vxor.u32 %v1281, 2147516416
        %v1730 = vxor.u32 %v1282, 2147516416
        %v1731 = vxor.u32 %v1283, 2147516416
        %v1732 = vxor.u32 %v1284, 2147516416
        %v1733 = vxor.u32 %v1285, 2147516416
        %v1734 = vxor.u32 %v1286, 2147516416
        %v1735 = vxor.u32 %v1287, 2147516416
        %v1736 = vxor.u32 %v1288, 2147516416
        %v1737 = vxor.u32 %v1289, 2147516416
        %v1738 = vxor.u32 %v1290, 2147516416
        %v1739 = vxor.u32 %v1291, 2147516416
        %v1740 = vxor.u32 %v1292, 2147516416
        %v1741 = vxor.u32 %v1293, 2147516416
        %v1742 = vxor.u32 %v1294, 2147516416
        %v1743 = vxor.u32 %v1295, 2147516416
        %v1744 = vxor.u32 %v1296, 2147516416
        %v1745 = vxor.u32 %v1297, 2147516416
        %v1746 = vxor.u32 %v1298, 2147516416
        %v1747 = vxor.u32 %v1299, 2147516416
        %v1748 = vxor.u32 %v1300, 2147516416
        %v1749 = vxor.u32 %v1301, 2147516416
        %v1750 = vxor.u32 %v1302, 2147516416
        %v1751 = vxor.u32 %v1303, 2147516416
        %v1752 = vxor.u32 %v1304, 2147516416
        %v1753 = vxor.u32 %v1305, 2147516416
        %v1754 = vxor.u32 %v1306, 2147516416
        %v1755 = vxor.u32 %v1307, 2147516416
        %v1756 = vxor.u32 %v1308, 2147516416
        %v1758 = vmul.bf16 %v1693, 1069105081
        %v1759 = vpow.bf16.pop %v1758
        %v1761 = vmul.bf16 %v1694, 1069105081
        %v1762 = vpow.bf16.pop %v1761
        %v1764 = vmul.bf16 %v1695, 1069105081
        %v1765 = vpow.bf16.pop %v1764
        %v1767 = vmul.bf16 %v1696, 1069105081
        %v1768 = vpow.bf16.pop %v1767
        %v1770 = vmul.bf16 %v1697, 1069105081
        %v1771 = vpow.bf16.pop %v1770
        %v1773 = vmul.bf16 %v1698, 1069105081
        %v1774 = vpow.bf16.pop %v1773
        %v1776 = vmul.bf16 %v1699, 1069105081
        %v1777 = vpow.bf16.pop %v1776
        %v1779 = vmul.bf16 %v1700, 1069105081
        %v1780 = vpow.bf16.pop %v1779
        %v1782 = vmul.bf16 %v1701, 1069105081
        %v1783 = vpow.bf16.pop %v1782
        %v1785 = vmul.bf16 %v1702, 1069105081
        %v1786 = vpow.bf16.pop %v1785
        %v1788 = vmul.bf16 %v1703, 1069105081
        %v1789 = vpow.bf16.pop %v1788
        %v1791 = vmul.bf16 %v1704, 1069105081
        %v1792 = vpow.bf16.pop %v1791
        %v1794 = vmul.bf16 %v1705, 1069105081
        %v1795 = vpow.bf16.pop %v1794
        %v1797 = vmul.bf16 %v1706, 1069105081
        %v1798 = vpow.bf16.pop %v1797
        %v1800 = vmul.bf16 %v1707, 1069105081
        %v1801 = vpow.bf16.pop %v1800
        %v1803 = vmul.bf16 %v1708, 1069105081
        %v1804 = vpow.bf16.pop %v1803
        %v1806 = vmul.bf16 %v1709, 1069105081
        %v1807 = vpow.bf16.pop %v1806
        %v1809 = vmul.bf16 %v1710, 1069105081
        %v1810 = vpow.bf16.pop %v1809
        %v1812 = vmul.bf16 %v1711, 1069105081
        %v1813 = vpow.bf16.pop %v1812
        %v1815 = vmul.bf16 %v1712, 1069105081
        %v1816 = vpow.bf16.pop %v1815
        %v1818 = vmul.bf16 %v1713, 1069105081
        %v1819 = vpow.bf16.pop %v1818
        %v1821 = vmul.bf16 %v1714, 1069105081
        %v1822 = vpow.bf16.pop %v1821
        %v1824 = vmul.bf16 %v1715, 1069105081
        %v1825 = vpow.bf16.pop %v1824
        %v1827 = vmul.bf16 %v1716, 1069105081
        %v1828 = vpow.bf16.pop %v1827
        %v1830 = vmul.bf16 %v1717, 1069105081
        %v1831 = vpow.bf16.pop %v1830
        %v1833 = vmul.bf16 %v1718, 1069105081
        %v1834 = vpow.bf16.pop %v1833
        %v1836 = vmul.bf16 %v1719, 1069105081
        %v1837 = vpow.bf16.pop %v1836
        %v1839 = vmul.bf16 %v1720, 1069105081
        %v1840 = vpow.bf16.pop %v1839
        %v1842 = vmul.bf16 %v1721, 1069105081
        %v1843 = vpow.bf16.pop %v1842
        %v1845 = vmul.bf16 %v1722, 1069105081
        %v1846 = vpow.bf16.pop %v1845
        %v1848 = vmul.bf16 %v1723, 1069105081
        %v1849 = vpow.bf16.pop %v1848
        %v1851 = vmul.bf16 %v1724, 1069105081
        %v1852 = vpow.bf16.pop %v1851
        %v1854 = vmul.bf16 %v1725, 1069105081
        %v1855 = vpow.bf16.pop %v1854
        %v1857 = vmul.bf16 %v1726, 1069105081
        %v1858 = vpow.bf16.pop %v1857
        %v1860 = vmul.bf16 %v1727, 1069105081
        %v1861 = vpow.bf16.pop %v1860
        %v1863 = vmul.bf16 %v1728, 1069105081
        %v1864 = vpow.bf16.pop %v1863
        %v1866 = vmul.bf16 %v1729, 1069105081
        %v1867 = vpow.bf16.pop %v1866
        %v1869 = vmul.bf16 %v1730, 1069105081
        %v1870 = vpow.bf16.pop %v1869
        %v1872 = vmul.bf16 %v1731, 1069105081
        %v1873 = vpow.bf16.pop %v1872
        %v1875 = vmul.bf16 %v1732, 1069105081
        %v1876 = vpow.bf16.pop %v1875
        %v1878 = vmul.bf16 %v1733, 1069105081
        %v1879 = vpow.bf16.pop %v1878
        %v1881 = vmul.bf16 %v1734, 1069105081
        %v1882 = vpow.bf16.pop %v1881
        %v1884 = vmul.bf16 %v1735, 1069105081
        %v1885 = vpow.bf16.pop %v1884
        %v1887 = vmul.bf16 %v1736, 1069105081
        %v1888 = vpow.bf16.pop %v1887
        %v1890 = vmul.bf16 %v1737, 1069105081
        %v1891 = vpow.bf16.pop %v1890
        %v1893 = vmul.bf16 %v1738, 1069105081
        %v1894 = vpow.bf16.pop %v1893
        %v1896 = vmul.bf16 %v1739, 1069105081
        %v1897 = vpow.bf16.pop %v1896
        %v1899 = vmul.bf16 %v1740, 1069105081
        %v1900 = vpow.bf16.pop %v1899
        %v1902 = vmul.bf16 %v1741, 1069105081
        %v1903 = vpow.bf16.pop %v1902
        %v1905 = vmul.bf16 %v1742, 1069105081
        %v1906 = vpow.bf16.pop %v1905
        %v1908 = vmul.bf16 %v1743, 1069105081
        %v1909 = vpow.bf16.pop %v1908
        %v1911 = vmul.bf16 %v1744, 1069105081
        %v1912 = vpow.bf16.pop %v1911
        %v1914 = vmul.bf16 %v1745, 1069105081
        %v1915 = vpow.bf16.pop %v1914
        %v1917 = vmul.bf16 %v1746, 1069105081
        %v1918 = vpow.bf16.pop %v1917
        %v1920 = vmul.bf16 %v1747, 1069105081
        %v1921 = vpow.bf16.pop %v1920
        %v1923 = vmul.bf16 %v1748, 1069105081
        %v1924 = vpow.bf16.pop %v1923
        %v1926 = vmul.bf16 %v1749, 1069105081
        %v1927 = vpow.bf16.pop %v1926
        %v1929 = vmul.bf16 %v1750, 1069105081
        %v1930 = vpow.bf16.pop %v1929
        %v1932 = vmul.bf16 %v1751, 1069105081
        %v1933 = vpow.bf16.pop %v1932
        %v1935 = vmul.bf16 %v1752, 1069105081
        %v1936 = vpow.bf16.pop %v1935
        %v1938 = vmul.bf16 %v1753, 1069105081
        %v1939 = vpow.bf16.pop %v1938
        %v1941 = vmul.bf16 %v1754, 1069105081
        %v1942 = vpow.bf16.pop %v1941
        %v1944 = vmul.bf16 %v1755, 1069105081
        %v1945 = vpow.bf16.pop %v1944
        %v1947 = vmul.bf16 %v1756, 1069105081
        %v1948 = vpow.bf16.pop %v1947
        %v1949 = vadd.bf16 %v1759, 1065369472
        %v1950 = vadd.bf16 %v1762, 1065369472
        %v1951 = vadd.bf16 %v1765, 1065369472
        %v1952 = vadd.bf16 %v1768, 1065369472
        %v1953 = vadd.bf16 %v1771, 1065369472
        %v1954 = vadd.bf16 %v1774, 1065369472
        %v1955 = vadd.bf16 %v1777, 1065369472
        %v1956 = vadd.bf16 %v1780, 1065369472
        %v1957 = vadd.bf16 %v1783, 1065369472
        %v1958 = vadd.bf16 %v1786, 1065369472
        %v1959 = vadd.bf16 %v1789, 1065369472
        %v1960 = vadd.bf16 %v1792, 1065369472
        %v1961 = vadd.bf16 %v1795, 1065369472
        %v1962 = vadd.bf16 %v1798, 1065369472
        %v1963 = vadd.bf16 %v1801, 1065369472
        %v1964 = vadd.bf16 %v1804, 1065369472
        %v1965 = vadd.bf16 %v1807, 1065369472
        %v1966 = vadd.bf16 %v1810, 1065369472
        %v1967 = vadd.bf16 %v1813, 1065369472
        %v1968 = vadd.bf16 %v1816, 1065369472
        %v1969 = vadd.bf16 %v1819, 1065369472
        %v1970 = vadd.bf16 %v1822, 1065369472
        %v1971 = vadd.bf16 %v1825, 1065369472
        %v1972 = vadd.bf16 %v1828, 1065369472
        %v1973 = vadd.bf16 %v1831, 1065369472
        %v1974 = vadd.bf16 %v1834, 1065369472
        %v1975 = vadd.bf16 %v1837, 1065369472
        %v1976 = vadd.bf16 %v1840, 1065369472
        %v1977 = vadd.bf16 %v1843, 1065369472
        %v1978 = vadd.bf16 %v1846, 1065369472
        %v1979 = vadd.bf16 %v1849, 1065369472
        %v1980 = vadd.bf16 %v1852, 1065369472
        %v1981 = vadd.bf16 %v1855, 1065369472
        %v1982 = vadd.bf16 %v1858, 1065369472
        %v1983 = vadd.bf16 %v1861, 1065369472
        %v1984 = vadd.bf16 %v1864, 1065369472
        %v1985 = vadd.bf16 %v1867, 1065369472
        %v1986 = vadd.bf16 %v1870, 1065369472
        %v1987 = vadd.bf16 %v1873, 1065369472
        %v1988 = vadd.bf16 %v1876, 1065369472
        %v1989 = vadd.bf16 %v1879, 1065369472
        %v1990 = vadd.bf16 %v1882, 1065369472
        %v1991 = vadd.bf16 %v1885, 1065369472
        %v1992 = vadd.bf16 %v1888, 1065369472
        %v1993 = vadd.bf16 %v1891, 1065369472
        %v1994 = vadd.bf16 %v1894, 1065369472
        %v1995 = vadd.bf16 %v1897, 1065369472
        %v1996 = vadd.bf16 %v1900, 1065369472
        %v1997 = vadd.bf16 %v1903, 1065369472
        %v1998 = vadd.bf16 %v1906, 1065369472
        %v1999 = vadd.bf16 %v1909, 1065369472
        %v2000 = vadd.bf16 %v1912, 1065369472
        %v2001 = vadd.bf16 %v1915, 1065369472
        %v2002 = vadd.bf16 %v1918, 1065369472
        %v2003 = vadd.bf16 %v1921, 1065369472
        %v2004 = vadd.bf16 %v1924, 1065369472
        %v2005 = vadd.bf16 %v1927, 1065369472
        %v2006 = vadd.bf16 %v1930, 1065369472
        %v2007 = vadd.bf16 %v1933, 1065369472
        %v2008 = vadd.bf16 %v1936, 1065369472
        %v2009 = vadd.bf16 %v1939, 1065369472
        %v2010 = vadd.bf16 %v1942, 1065369472
        %v2011 = vadd.bf16 %v1945, 1065369472
        %v2012 = vadd.bf16 %v1948, 1065369472
        %v2013 = vrcp.bf16.pop %v1949
        %v2014 = vmul.bf16 1065369472, %v2013
        %v2015 = vrcp.bf16.pop %v1950
        %v2016 = vmul.bf16 1065369472, %v2015
        %v2017 = vrcp.bf16.pop %v1951
        %v2018 = vmul.bf16 1065369472, %v2017
        %v2019 = vrcp.bf16.pop %v1952
        %v2020 = vmul.bf16 1065369472, %v2019
        %v2021 = vrcp.bf16.pop %v1953
        %v2022 = vmul.bf16 1065369472, %v2021
        %v2023 = vrcp.bf16.pop %v1954
        %v2024 = vmul.bf16 1065369472, %v2023
        %v2025 = vrcp.bf16.pop %v1955
        %v2026 = vmul.bf16 1065369472, %v2025
        %v2027 = vrcp.bf16.pop %v1956
        %v2028 = vmul.bf16 1065369472, %v2027
        %v2029 = vrcp.bf16.pop %v1957
        %v2030 = vmul.bf16 1065369472, %v2029
        %v2031 = vrcp.bf16.pop %v1958
        %v2032 = vmul.bf16 1065369472, %v2031
        %v2033 = vrcp.bf16.pop %v1959
        %v2034 = vmul.bf16 1065369472, %v2033
        %v2035 = vrcp.bf16.pop %v1960
        %v2036 = vmul.bf16 1065369472, %v2035
        %v2037 = vrcp.bf16.pop %v1961
        %v2038 = vmul.bf16 1065369472, %v2037
        %v2039 = vrcp.bf16.pop %v1962
        %v2040 = vmul.bf16 1065369472, %v2039
        %v2041 = vrcp.bf16.pop %v1963
        %v2042 = vmul.bf16 1065369472, %v2041
        %v2043 = vrcp.bf16.pop %v1964
        %v2044 = vmul.bf16 1065369472, %v2043
        %v2045 = vrcp.bf16.pop %v1965
        %v2046 = vmul.bf16 1065369472, %v2045
        %v2047 = vrcp.bf16.pop %v1966
        %v2048 = vmul.bf16 1065369472, %v2047
        %v2049 = vrcp.bf16.pop %v1967
        %v2050 = vmul.bf16 1065369472, %v2049
        %v2051 = vrcp.bf16.pop %v1968
        %v2052 = vmul.bf16 1065369472, %v2051
        %v2053 = vrcp.bf16.pop %v1969
        %v2054 = vmul.bf16 1065369472, %v2053
        %v2055 = vrcp.bf16.pop %v1970
        %v2056 = vmul.bf16 1065369472, %v2055
        %v2057 = vrcp.bf16.pop %v1971
        %v2058 = vmul.bf16 1065369472, %v2057
        %v2059 = vrcp.bf16.pop %v1972
        %v2060 = vmul.bf16 1065369472, %v2059
        %v2061 = vrcp.bf16.pop %v1973
        %v2062 = vmul.bf16 1065369472, %v2061
        %v2063 = vrcp.bf16.pop %v1974
        %v2064 = vmul.bf16 1065369472, %v2063
        %v2065 = vrcp.bf16.pop %v1975
        %v2066 = vmul.bf16 1065369472, %v2065
        %v2067 = vrcp.bf16.pop %v1976
        %v2068 = vmul.bf16 1065369472, %v2067
        %v2069 = vrcp.bf16.pop %v1977
        %v2070 = vmul.bf16 1065369472, %v2069
        %v2071 = vrcp.bf16.pop %v1978
        %v2072 = vmul.bf16 1065369472, %v2071
        %v2073 = vrcp.bf16.pop %v1979
        %v2074 = vmul.bf16 1065369472, %v2073
        %v2075 = vrcp.bf16.pop %v1980
        %v2076 = vmul.bf16 1065369472, %v2075
        %v2077 = vrcp.bf16.pop %v1981
        %v2078 = vmul.bf16 1065369472, %v2077
        %v2079 = vrcp.bf16.pop %v1982
        %v2080 = vmul.bf16 1065369472, %v2079
        %v2081 = vrcp.bf16.pop %v1983
        %v2082 = vmul.bf16 1065369472, %v2081
        %v2083 = vrcp.bf16.pop %v1984
        %v2084 = vmul.bf16 1065369472, %v2083
        %v2085 = vrcp.bf16.pop %v1985
        %v2086 = vmul.bf16 1065369472, %v2085
        %v2087 = vrcp.bf16.pop %v1986
        %v2088 = vmul.bf16 1065369472, %v2087
        %v2089 = vrcp.bf16.pop %v1987
        %v2090 = vmul.bf16 1065369472, %v2089
        %v2091 = vrcp.bf16.pop %v1988
        %v2092 = vmul.bf16 1065369472, %v2091
        %v2093 = vrcp.bf16.pop %v1989
        %v2094 = vmul.bf16 1065369472, %v2093
        %v2095 = vrcp.bf16.pop %v1990
        %v2096 = vmul.bf16 1065369472, %v2095
        %v2097 = vrcp.bf16.pop %v1991
        %v2098 = vmul.bf16 1065369472, %v2097
        %v2099 = vrcp.bf16.pop %v1992
        %v2100 = vmul.bf16 1065369472, %v2099
        %v2101 = vrcp.bf16.pop %v1993
        %v2102 = vmul.bf16 1065369472, %v2101
        %v2103 = vrcp.bf16.pop %v1994
        %v2104 = vmul.bf16 1065369472, %v2103
        %v2105 = vrcp.bf16.pop %v1995
        %v2106 = vmul.bf16 1065369472, %v2105
        %v2107 = vrcp.bf16.pop %v1996
        %v2108 = vmul.bf16 1065369472, %v2107
        %v2109 = vrcp.bf16.pop %v1997
        %v2110 = vmul.bf16 1065369472, %v2109
        %v2111 = vrcp.bf16.pop %v1998
        %v2112 = vmul.bf16 1065369472, %v2111
        %v2113 = vrcp.bf16.pop %v1999
        %v2114 = vmul.bf16 1065369472, %v2113
        %v2115 = vrcp.bf16.pop %v2000
        %v2116 = vmul.bf16 1065369472, %v2115
        %v2117 = vrcp.bf16.pop %v2001
        %v2118 = vmul.bf16 1065369472, %v2117
        %v2119 = vrcp.bf16.pop %v2002
        %v2120 = vmul.bf16 1065369472, %v2119
        %v2121 = vrcp.bf16.pop %v2003
        %v2122 = vmul.bf16 1065369472, %v2121
        %v2123 = vrcp.bf16.pop %v2004
        %v2124 = vmul.bf16 1065369472, %v2123
        %v2125 = vrcp.bf16.pop %v2005
        %v2126 = vmul.bf16 1065369472, %v2125
        %v2127 = vrcp.bf16.pop %v2006
        %v2128 = vmul.bf16 1065369472, %v2127
        %v2129 = vrcp.bf16.pop %v2007
        %v2130 = vmul.bf16 1065369472, %v2129
        %v2131 = vrcp.bf16.pop %v2008
        %v2132 = vmul.bf16 1065369472, %v2131
        %v2133 = vrcp.bf16.pop %v2009
        %v2134 = vmul.bf16 1065369472, %v2133
        %v2135 = vrcp.bf16.pop %v2010
        %v2136 = vmul.bf16 1065369472, %v2135
        %v2137 = vrcp.bf16.pop %v2011
        %v2138 = vmul.bf16 1065369472, %v2137
        %v2139 = vrcp.bf16.pop %v2012
        %v2140 = vmul.bf16 1065369472, %v2139
        %v2141 = vld [vmem:[%s425] sm:$0xff]
        %v2143 = vunpack.c.l.b16 %v2141
        %v2144 = vunpack.c.h.b16 %v2141
        %v2145 = vpack.c.b16 %v2143, %v2143
        %v2146 = vpack.c.b16 %v2144, %v2144
        %2149 = vmatprep.subr.bf16.mxu0 %v2016
        %2150 = vmatpush1.bf16.msra.mxu0 %v2014
        %2151 = vmatprep.subr.bf16.mxu0 %v2024
        %2152 = vmatpush1.bf16.msra.mxu0 %v2022
        %2153 = vmatprep.subr.bf16.mxu0 %v2032
        %2154 = vmatpush1.bf16.msra.mxu0 %v2030
        %2155 = vmatprep.subr.bf16.mxu0 %v2040
        %2156 = vmatpush1.bf16.msra.mxu0 %v2038
        %2157 = vmatprep.subr.bf16.mxu0 %v2048
        %2158 = vmatpush1.bf16.msra.mxu0 %v2046
        %2159 = vmatprep.subr.bf16.mxu0 %v2056
        %2160 = vmatpush1.bf16.msra.mxu0 %v2054
        %2161 = vmatprep.subr.bf16.mxu0 %v2064
        %2162 = vmatpush1.bf16.msra.mxu0 %v2062
        %2163 = vmatprep.subr.bf16.mxu0 %v2072
        %2164 = vmatpush1.bf16.msra.mxu0 %v2070
        %2165 = vmatprep.subr.bf16.mxu0 %v2080
        %2166 = vmatpush1.bf16.msra.mxu0 %v2078
        %2167 = vmatprep.subr.bf16.mxu0 %v2088
        %2168 = vmatpush1.bf16.msra.mxu0 %v2086
        %2169 = vmatprep.subr.bf16.mxu0 %v2096
        %2170 = vmatpush1.bf16.msra.mxu0 %v2094
        %2171 = vmatprep.subr.bf16.mxu0 %v2104
        %2172 = vmatpush1.bf16.msra.mxu0 %v2102
        %2173 = vmatprep.subr.bf16.mxu0 %v2112
        %2174 = vmatpush1.bf16.msra.mxu0 %v2110
        %2175 = vmatprep.subr.bf16.mxu0 %v2120
        %2176 = vmatpush1.bf16.msra.mxu0 %v2118
        %2177 = vmatprep.subr.bf16.mxu0 %v2128
        %2178 = vmatpush1.bf16.msra.mxu0 %v2126
        %2179 = vmatprep.subr.bf16.mxu0 %v2136
        %2180 = vmatpush1.bf16.msra.mxu0 %v2134
        %2181 = vmatprep.mubr.bf16.mxu0 %v2146
        %2182 = vmatmul.mubr.bf16.gmra.mrb[0].mxu0 %v2145
        %v2183 = vpop.f32.mrb[0].mxu0
        %v2184 = vadd.f32 0.0, %v2183
        %v2185 = vpop.f32.mrb[0].mxu0
        %v2186 = vadd.f32 0.0, %v2185
        %v2187 = vpop.f32.mrb[0].mxu0
        %v2188 = vpop.f32.mrb[0].mxu0
        %2189 = vdwg.mxu0
        %2190 = vmatprep.subr.bf16.mxu0 %v2020
        %2191 = vmatpush1.bf16.msra.mxu0 %v2018
        %2192 = vmatprep.subr.bf16.mxu0 %v2028
        %2193 = vmatpush1.bf16.msra.mxu0 %v2026
        %2194 = vmatprep.subr.bf16.mxu0 %v2036
        %2195 = vmatpush1.bf16.msra.mxu0 %v2034
        %2196 = vmatprep.subr.bf16.mxu0 %v2044
        %2197 = vmatpush1.bf16.msra.mxu0 %v2042
        %2198 = vmatprep.subr.bf16.mxu0 %v2052
        %2199 = vmatpush1.bf16.msra.mxu0 %v2050
        %2200 = vmatprep.subr.bf16.mxu0 %v2060
        %2201 = vmatpush1.bf16.msra.mxu0 %v2058
        %2202 = vmatprep.subr.bf16.mxu0 %v2068
        %2203 = vmatpush1.bf16.msra.mxu0 %v2066
        %2204 = vmatprep.subr.bf16.mxu0 %v2076
        %2205 = vmatpush1.bf16.msra.mxu0 %v2074
        %2206 = vmatprep.subr.bf16.mxu0 %v2084
        %2207 = vmatpush1.bf16.msra.mxu0 %v2082
        %2208 = vmatprep.subr.bf16.mxu0 %v2092
        %2209 = vmatpush1.bf16.msra.mxu0 %v2090
        %2210 = vmatprep.subr.bf16.mxu0 %v2100
        %2211 = vmatpush1.bf16.msra.mxu0 %v2098
        %2212 = vmatprep.subr.bf16.mxu0 %v2108
        %2213 = vmatpush1.bf16.msra.mxu0 %v2106
        %2214 = vmatprep.subr.bf16.mxu0 %v2116
        %2215 = vmatpush1.bf16.msra.mxu0 %v2114
        %2216 = vmatprep.subr.bf16.mxu0 %v2124
        %2217 = vmatpush1.bf16.msra.mxu0 %v2122
        %2218 = vmatprep.subr.bf16.mxu0 %v2132
        %2219 = vmatpush1.bf16.msra.mxu0 %v2130
        %2220 = vmatprep.subr.bf16.mxu0 %v2140
        %2221 = vmatpush1.bf16.msra.mxu0 %v2138
        %2222 = vmatprep.mubr.bf16.mxu0 %v2146
        %2223 = vmatmul.mubr.bf16.gmra.mrb[0].mxu0 %v2145
        %v2224 = vpop.f32.mrb[0].mxu0
        %v2225 = vadd.f32 0.0, %v2224
        %v2226 = vpop.f32.mrb[0].mxu0
        %v2227 = vadd.f32 0.0, %v2226
        %v2228 = vpop.f32.mrb[0].mxu0
        %v2229 = vpop.f32.mrb[0].mxu0
        %2230 = vdwg.mxu0
        %p2231 = scmp.eq.s32.totalorder %s37, 0
        // Predicated region
        $region69: #{cp_mega_voxels_forward.1} parent=43 // pred_check
          %p2232 = pneg %p2231
        $region70: #{cp_mega_voxels_forward.1} parent=43 // pred_check_branch
          %2234 = sbr.rel (%p2232) target = $region72
        $region71: #{cp_mega_voxels_forward.1} parent=43 // pred_region
          %v2235 = vld [vmem:[#allocation9] sm:$0xf]
          %v2236 = vld [vmem:[%s412] sm:$0xff]
          %v2237 = vld [vmem:[%s412 + $0x8] sm:$0xff]
          %v2240 = vunpack.c.l.b16 %v2236
          %v2241 = vunpack.c.h.b16 %v2236
          %v2242 = vunpack.c.l.b16 %v2237
          %v2243 = vunpack.c.h.b16 %v2237
          %v2244 = vpack.c.b16 %v2240, %v2240
          %v2245 = vpack.c.b16 %v2241, %v2241
          %v2246 = vpack.c.b16 %v2242, %v2242
          %v2247 = vpack.c.b16 %v2243, %v2243
          %v2249 = vsel %vm797, %v2235, 0
          %v2252 = vsel %vm846, %v2244, 0
          %v2255 = vsel %vm846, %v2245, 0
          %v2258 = vsel %vm846, %v2246, 0
          %v2261 = vsel %vm846, %v2247, 0
          %2263 = vmatprep.subr.bf16.mxu0 %v2255
          %2264 = vmatpush1.bf16.msra.mxu0 %v2252
          %2265 = vmatprep.subr.bf16.mxu0 0
          %2266 = vmatpush1.bf16.msra.mxu0 0
          %2267 = vmatprep.subr.bf16.mxu0 0
          %2268 = vmatpush1.bf16.msra.mxu0 0
          %2269 = vmatprep.subr.bf16.mxu0 0
          %2270 = vmatpush1.bf16.msra.mxu0 0
          %2271 = vmatprep.subr.bf16.mxu0 0
          %2272 = vmatpush1.bf16.msra.mxu0 0
          %2273 = vmatprep.subr.bf16.mxu0 0
          %2274 = vmatpush1.bf16.msra.mxu0 0
          %2275 = vmatprep.subr.bf16.mxu0 0
          %2276 = vmatpush1.bf16.msra.mxu0 0
          %2277 = vmatprep.subr.bf16.mxu0 0
          %2278 = vmatpush1.bf16.msra.mxu0 0
          %2279 = vmatprep.subr.bf16.mxu0 0
          %2280 = vmatpush1.bf16.msra.mxu0 0
          %2281 = vmatprep.subr.bf16.mxu0 0
          %2282 = vmatpush1.bf16.msra.mxu0 0
          %2283 = vmatprep.subr.bf16.mxu0 0
          %2284 = vmatpush1.bf16.msra.mxu0 0
          %2285 = vmatprep.subr.bf16.mxu0 0
          %2286 = vmatpush1.bf16.msra.mxu0 0
          %2287 = vmatprep.subr.bf16.mxu0 0
          %2288 = vmatpush1.bf16.msra.mxu0 0
          %2289 = vmatprep.subr.bf16.mxu0 0
          %2290 = vmatpush1.bf16.msra.mxu0 0
          %2291 = vmatprep.subr.bf16.mxu0 0
          %2292 = vmatpush1.bf16.msra.mxu0 0
          %2293 = vmatprep.subr.bf16.mxu0 0
          %2294 = vmatpush1.bf16.msra.mxu0 0
          %2295 = vmatprep.mubr.bf16.mxu0 0
          %2296 = vmatmul.mubr.bf16.gmra.mrb[0].mxu0 %v2249
          %v2297 = vpop.f32.mrb[0].mxu0
          %v2298 = vadd.f32 %v2184, %v2297
          %v2299 = vpop.f32.mrb[0].mxu0
          %v2300 = vadd.f32 %v2186, %v2299
          %v2301 = vpop.f32.mrb[0].mxu0
          %v2302 = vpop.f32.mrb[0].mxu0
          %2303 = vdwg.mxu0
          %2304 = vmatprep.subr.bf16.mxu0 %v2261
          %2305 = vmatpush1.bf16.msra.mxu0 %v2258
          %2306 = vmatprep.subr.bf16.mxu0 0
          %2307 = vmatpush1.bf16.msra.mxu0 0
          %2308 = vmatprep.subr.bf16.mxu0 0
          %2309 = vmatpush1.bf16.msra.mxu0 0
          %2310 = vmatprep.subr.bf16.mxu0 0
          %2311 = vmatpush1.bf16.msra.mxu0 0
          %2312 = vmatprep.subr.bf16.mxu0 0
          %2313 = vmatpush1.bf16.msra.mxu0 0
          %2314 = vmatprep.subr.bf16.mxu0 0
          %2315 = vmatpush1.bf16.msra.mxu0 0
          %2316 = vmatprep.subr.bf16.mxu0 0
          %2317 = vmatpush1.bf16.msra.mxu0 0
          %2318 = vmatprep.subr.bf16.mxu0 0
          %2319 = vmatpush1.bf16.msra.mxu0 0
          %2320 = vmatprep.subr.bf16.mxu0 0
          %2321 = vmatpush1.bf16.msra.mxu0 0
          %2322 = vmatprep.subr.bf16.mxu0 0
          %2323 = vmatpush1.bf16.msra.mxu0 0
          %2324 = vmatprep.subr.bf16.mxu0 0
          %2325 = vmatpush1.bf16.msra.mxu0 0
          %2326 = vmatprep.subr.bf16.mxu0 0
          %2327 = vmatpush1.bf16.msra.mxu0 0
          %2328 = vmatprep.subr.bf16.mxu0 0
          %2329 = vmatpush1.bf16.msra.mxu0 0
          %2330 = vmatprep.subr.bf16.mxu0 0
          %2331 = vmatpush1.bf16.msra.mxu0 0
          %2332 = vmatprep.subr.bf16.mxu0 0
          %2333 = vmatpush1.bf16.msra.mxu0 0
          %2334 = vmatprep.subr.bf16.mxu0 0
          %2335 = vmatpush1.bf16.msra.mxu0 0
          %2336 = vmatprep.mubr.bf16.mxu0 0
          %2337 = vmatmul.mubr.bf16.gmra.mrb[0].mxu0 %v2249
          %v2338 = vpop.f32.mrb[0].mxu0
          %v2339 = vadd.f32 %v2225, %v2338
          %v2340 = vpop.f32.mrb[0].mxu0
          %v2341 = vadd.f32 %v2227, %v2340
          %v2342 = vpop.f32.mrb[0].mxu0
          %v2343 = vpop.f32.mrb[0].mxu0
          %2344 = vdwg.mxu0
          %2345 = vst [vmem:[%s470] sm:$0xff] %v2298
          %2346 = vst [vmem:[%s470 + $0x8] sm:$0xff] %v2300
          %2347 = vst [vmem:[%s470 + $0x10] sm:$0xff] %v2339
          %2348 = vst [vmem:[%s470 + $0x18] sm:$0xff] %v2341
        $region72: #{cp_mega_voxels_forward.1} parent=43 // pred_fallthru
          _
        %p2349 = scmp.gt.s32.totalorder %s37, 0
        // Predicated region
        $region73: #{cp_mega_voxels_forward.1} parent=43 // pred_check
          %p2350 = pneg %p2349
        $region74: #{cp_mega_voxels_forward.1} parent=43 // pred_check_branch
          %2352 = sbr.rel (%p2350) target = $region76
        $region75: #{cp_mega_voxels_forward.1} parent=43 // pred_region
          %v2353 = vld [vmem:[%s470] sm:$0xff]
          %v2354 = vld [vmem:[%s470 + $0x8] sm:$0xff]
          %v2355 = vld [vmem:[%s470 + $0x10] sm:$0xff]
          %v2356 = vld [vmem:[%s470 + $0x18] sm:$0xff]
          %v2357 = vadd.f32 %v2353, %v2184
          %v2358 = vadd.f32 %v2354, %v2186
          %v2359 = vadd.f32 %v2355, %v2225
          %v2360 = vadd.f32 %v2356, %v2227
          %2361 = vst [vmem:[%s470] sm:$0xff] %v2357
          %2362 = vst [vmem:[%s470 + $0x8] sm:$0xff] %v2358
          %2363 = vst [vmem:[%s470 + $0x10] sm:$0xff] %v2359
          %2364 = vst [vmem:[%s470 + $0x18] sm:$0xff] %v2360
        $region76: #{cp_mega_voxels_forward.1} parent=43 // pred_fallthru
          _
        %s2365 = sand.u32 %s218, 1
        %s2366 = scalar_lea.sflag [#allocation4], %s2365
        %s2367 = sand.u32 %s218, 1
        %s2368 = smul.addr %s2367, 512
        %s2369 = scalar_lea.vmem [#allocation12], %s2368
        %s2370 = sand.u32 %s246, 1
        %s2371 = scalar_lea.sflag [#allocation14], %s2370
        %s2372 = sand.u32 %s246, 1
        %s2373 = smul.addr %s2372, 32
        %s2374 = scalar_lea.vmem [#allocation13], %s2373
        // Predicated region
        $region77: #{cp_mega_voxels_forward.1} parent=43 // pred_check
          %p2375 = pneg %p228
        $region78: #{cp_mega_voxels_forward.1} parent=43 // pred_check_branch
          %2377 = sbr.rel (%p2375) target = $region80
        $region79: #{cp_mega_voxels_forward.1} parent=43 // pred_region
          %s2378 = smul.u32 32, %s37
          %s2379 = smul.u32 4, %s36
          %s2381 = ssub.s32 8192, 8192
          %2382 = vsyncadd %s2366, %s2381
          %s2383 = smul.addr %s2378, 4
          %s2384 = sadd.s32 %s2379, %s2383
          %s2385 = smul.addr %s35, 128
          %s2386 = sadd.s32 %s2384, %s2385
          %s2387 = smul.addr %s2386, 64
          %s2388 = scalar_lea.hbm %s6, %s2387
          %s2389 = sshll.u32 %s2369, 4
          %s2390 = int_to_ptr.vmem [resolvable:$true] %s2389
          %2395 = dma.vmem_to_hbm [thread:$0]  %s2390, 8192, %s2388, %s2366, 256, 256, 16
        $region80: #{cp_mega_voxels_forward.1} parent=43 // pred_fallthru
          _
        // Predicated region
        $region81: #{cp_mega_voxels_forward.1} parent=43 // pred_check
          %p2396 = pneg %p256
        $region82: #{cp_mega_voxels_forward.1} parent=43 // pred_check_branch
          %2398 = sbr.rel (%p2396) target = $region84
        $region83: #{cp_mega_voxels_forward.1} parent=43 // pred_region
          %s2399 = smul.u32 4, %s36
          %s2401 = ssub.s32 512, 512
          %2402 = vsyncadd %s2371, %s2401
          %s2403 = smul.addr %s35, 4
          %s2404 = sadd.s32 %s2399, %s2403
          %s2405 = smul.addr %s2404, 128
          %s2406 = scalar_lea.hbm %s7, %s2405
          %s2408 = sshll.u32 %s2374, 4
          %s2409 = int_to_ptr.vmem [resolvable:$true] %s2408
          %2411 = dma.vmem_to_hbm [thread:$0]  %s2409, 512, %s2406, %s2371
        $region84: #{cp_mega_voxels_forward.1} parent=43 // pred_fallthru
          _
      $region44: #{cp_mega_voxels_forward.1} parent=5 // pred_fallthru
        _
      %p2412 = scmp.le.s32.totalorder 2, %s25
      // Predicated region
      $region85: #{cp_mega_voxels_forward.1} parent=5 // pred_check
        %p2413 = pneg %p2412
      $region86: #{cp_mega_voxels_forward.1} parent=5 // pred_check_branch
        %2415 = sbr.rel (%p2413) target = $region88
      $region87: #{cp_mega_voxels_forward.1} parent=5 // pred_region
        %s2416 = ssub.s32 %s25, 2
        // Predicated region
        $region89: #{cp_mega_voxels_forward.1} parent=87 // pred_check
          %p2417 = pneg %p234
        $region90: #{cp_mega_voxels_forward.1} parent=87 // pred_check_branch
          %2419 = sbr.rel (%p2417) target = $region92
        $region91: #{cp_mega_voxels_forward.1} parent=87 // pred_region
          %s2420 = sand.u32 %s219, 1
          %s2421 = scalar_lea.sflag [#allocation4], %s2420
          %s2422 = sand.u32 %s219, 1
          %s2423 = smul.addr %s2422, 512
          %s2424 = scalar_lea.vmem [#allocation12], %s2423
          %2425 = dma.done %s2421, 8192
        $region92: #{cp_mega_voxels_forward.1} parent=87 // pred_fallthru
          _
        // Predicated region
        $region93: #{cp_mega_voxels_forward.1} parent=87 // pred_check
          %p2426 = pneg %p262
        $region94: #{cp_mega_voxels_forward.1} parent=87 // pred_check_branch
          %2428 = sbr.rel (%p2426) target = $region96
        $region95: #{cp_mega_voxels_forward.1} parent=87 // pred_region
          %s2429 = sand.u32 %s247, 1
          %s2430 = scalar_lea.sflag [#allocation14], %s2429
          %s2431 = sand.u32 %s247, 1
          %s2432 = smul.addr %s2431, 32
          %s2433 = scalar_lea.vmem [#allocation13], %s2432
          %2434 = dma.done %s2430, 512
        $region96: #{cp_mega_voxels_forward.1} parent=87 // pred_fallthru
          _
      $region88: #{cp_mega_voxels_forward.1} parent=5 // pred_fallthru
        _
    $region6: #{cp_mega_voxels_forward.1} parent=1 // loop_footer
      %s29 = sadd.s32 1, %s25
    $region7: #{cp_mega_voxels_forward.1} parent=1 // loop_footer_branch
      %24 = sbr.rel target = $region3
    $region8: #{cp_mega_voxels_forward.1} parent=1 // loop_exit
      _
    %2435 = vsyncpa [#allocation3], 1
    %s2436 = scalar_lea.sflag [#allocation3], 1
    %2437 = vsyncpa %s2436, 1
    %2438 = vsyncpa [#allocation6], 1
    %2439 = vsyncpa [#allocation11], 1
    %s2440 = scalar_lea.sflag [#allocation11], 1
    %2441 = vsyncpa %s2440, 1
    %2442 = vsyncpa [#allocation4], 1
    %s2443 = scalar_lea.sflag [#allocation4], 1
    %2444 = vsyncpa %s2443, 1
    %2445 = vsyncpa [#allocation14], 1
    %s2446 = scalar_lea.sflag [#allocation14], 1
    %2447 = vsyncpa %s2446, 1

</llo_original>
